<compile_context>
chip_gen: v7x
topology: tpu7x:2x2x1
jax: 0.10.0
libtpu: 0.0.40
codegen_flags: <defaults>
</compile_context>

<pallas_src>
import functools
import numpy as np

import jax
import jax.numpy as jnp
from jax.experimental import pallas as pl
from jax.experimental.pallas import tpu as pltpu

_GRAY_W = (0.2989, 0.587, 0.114)
_VMEM_LIMIT = 32 * 1024 * 1024  # safe for v5e/v6e (128 MiB) and v7x (64 MiB physical)


def _round_up(x, m):
    return ((x + m - 1) // m) * m


# --------------------------------------------------------------------------
# Kernel 1: fused color jitter, two-phase grid (phase 0: grayscale-sum for the
# contrast mean; phase 1: apply brightness/contrast/saturation/hue per row tile)
# --------------------------------------------------------------------------
def _color_jitter_kernel(fac_ref, img_ref, out_ref, sum_ref, *,
                         contrast_first, h_total, w_total, tile_h):
    phase = pl.program_id(0)
    tile = pl.program_id(1)

    b = fac_ref[0]
    c = fac_ref[1]
    s = fac_ref[2]
    hue_delta = fac_ref[3]

    # adjust_brightness: blend(img, 0, b) with clamp to [0, 1]
    r0 = jnp.clip(img_ref[0] * b, 0.0, 1.0)
    g0 = jnp.clip(img_ref[1] * b, 0.0, 1.0)
    b0 = jnp.clip(img_ref[2] * b, 0.0, 1.0)

    def gray(r, g, bl):
        return _GRAY_W[0] * r + _GRAY_W[1] * g + _GRAY_W[2] * bl

    def adjust_contrast(r, g, bl, mean):
        return (jnp.clip(c * r + (1.0 - c) * mean, 0.0, 1.0),
                jnp.clip(c * g + (1.0 - c) * mean, 0.0, 1.0),
                jnp.clip(c * bl + (1.0 - c) * mean, 0.0, 1.0))

    def adjust_sat_hue(r, g, bl):
        gr = gray(r, g, bl)
        r = jnp.clip(s * r + (1.0 - s) * gr, 0.0, 1.0)
        g = jnp.clip(s * g + (1.0 - s) * gr, 0.0, 1.0)
        bl = jnp.clip(s * bl + (1.0 - s) * gr, 0.0, 1.0)

        # adjust_hue: rgb -> hsv, shift hue, hsv -> rgb (torchvision float path).
        maxc = jnp.maximum(jnp.maximum(r, g), bl)
        minc = jnp.minimum(jnp.minimum(r, g), bl)
        eqc = maxc == minc
        cr = maxc - minc
        ones = jnp.ones_like(maxc)
        # one approximate reciprocal (EUP) reused instead of 4 full divides
        inv_maxc = pl.reciprocal(jnp.where(eqc, ones, maxc), approx=True)
        sat = cr * inv_maxc
        inv_cr = pl.reciprocal(jnp.where(eqc, ones, cr), approx=True)
        rc = (maxc - r) * inv_cr
        gc = (maxc - g) * inv_cr
        bc = (maxc - bl) * inv_cr
        hr = jnp.where(maxc == r, bc - gc, 0.0)
        hg = jnp.where((maxc == g) & (maxc != r), 2.0 + rc - bc, 0.0)
        hb = jnp.where((maxc != g) & (maxc != r), 4.0 + gc - rc, 0.0)
        h = (hr + hg + hb) * (1.0 / 6.0) + 1.0
        h = h - jnp.floor(h)          # mod 1
        h = h + hue_delta
        h = h - jnp.floor(h)          # mod 1

        h6 = h * 6.0
        i_f = jnp.floor(h6)
        f = h6 - i_f
        i = jnp.minimum(i_f.astype(jnp.int32), 5)
        v = maxc
        p = jnp.clip(v * (1.0 - sat), 0.0, 1.0)
        q = jnp.clip(v * (1.0 - sat * f), 0.0, 1.0)
        t = jnp.clip(v * (1.0 - sat * (1.0 - f)), 0.0, 1.0)

        def pick(c0, c1, c2, c3, c4, c5):
            out = jnp.where(i == 0, c0, c5)
            out = jnp.where(i == 1, c1, out)
            out = jnp.where(i == 2, c2, out)
            out = jnp.where(i == 3, c3, out)
            out = jnp.where(i == 4, c4, out)
            return out

        return (pick(v, q, p, p, t, v),
                pick(t, v, v, q, p, p),
                pick(p, p, t, v, v, q))

    @pl.when((phase == 0) & (tile == 0))
    def _():
        sum_ref[...] = jnp.zeros_like(sum_ref)

    # Phase 0: accumulate sum(grayscale(pre-contrast image)) for the global mean.
    @pl.when(phase == 0)
    def _():
        if contrast_first:
            gr = gray(r0, g0, b0)
        else:
            rr, gg, bb = adjust_sat_hue(r0, g0, b0)
            gr = gray(rr, gg, bb)
        if h_total % tile_h != 0:
            # exclude rows of the (padded) ragged last tile from the mean
            rows = tile * tile_h + jax.lax.broadcasted_iota(jnp.int32, gr.shape, 0)
            gr = jnp.where(rows < h_total, gr, 0.0)
        sum_ref[...] = sum_ref[...] + jnp.sum(gr)

    # Phase 1: apply the full jitter with the finalized mean; write channels directly.
    @pl.when(phase == 1)
    def _():
        mean = sum_ref[...] * (1.0 / float(h_total * w_total))   # (1,1), broadcasts
        if contrast_first:
            rr, gg, bb = adjust_contrast(r0, g0, b0, mean)
            rr, gg, bb = adjust_sat_hue(rr, gg, bb)
        else:
            rr, gg, bb = adjust_sat_hue(r0, g0, b0)
            rr, gg, bb = adjust_contrast(rr, gg, bb, mean)
        out_ref[0] = rr
        out_ref[1] = gg
        out_ref[2] = bb


def color_jitter(img, factors, contrast_first):
    C, H, W = img.shape
    tile_h = H if H <= 256 else 256
    n_h = pl.cdiv(H, tile_h)
    kern = functools.partial(_color_jitter_kernel, contrast_first=contrast_first,
                             h_total=H, w_total=W, tile_h=tile_h)
    return pl.pallas_call(
        kern,
        grid=(2, n_h),
        in_specs=[
            pl.BlockSpec(memory_space=pltpu.MemorySpace.SMEM),       # factors (4,)
            pl.BlockSpec((C, tile_h, W), lambda p, i: (0, i, 0)),
        ],
        out_specs=pl.BlockSpec((C, tile_h, W), lambda p, i: (0, i, 0)),
        out_shape=jax.ShapeDtypeStruct((C, H, W), jnp.float32),
        scratch_shapes=[pltpu.VMEM((1, 1), jnp.float32)],            # running gray sum
        compiler_params=pltpu.CompilerParams(
            dimension_semantics=("arbitrary", "arbitrary"),
            vmem_limit_bytes=_VMEM_LIMIT),
    )(factors, img)


# --------------------------------------------------------------------------
# Kernel 2: separable antialiased resize for the image (flip fused into cwt)
#   pass A (width):  (C*Hin, Win) @ (Win, Wout_p)   -- channels folded into M
#   pass B (height): (THo, Hin) @ (Hin, Wout_p)     -- tiled over (channel, Hout tile)
# bf16 operands, f32 accumulation; bf16 intermediate halves HBM traffic.
# --------------------------------------------------------------------------
def _resize_w_kernel(x_ref, cwt_ref, o_ref):
    o_ref[...] = jnp.dot(
        x_ref[...].astype(jnp.bfloat16), cwt_ref[...].astype(jnp.bfloat16),
        preferred_element_type=jnp.float32).astype(jnp.bfloat16)


def _resize_h_kernel(rh_ref, t_ref, o_ref):
    o_ref[0] = jnp.dot(
        rh_ref[...].astype(jnp.bfloat16), t_ref[0],
        preferred_element_type=jnp.float32)


def resize_image(x, rh, cwt):
    C, Hin, Win = x.shape
    Hout_p = rh.shape[0]
    Wout_p = cwt.shape[1]

    M = C * Hin
    tm = M if M <= 1024 else 512
    x2 = x.reshape(M, Win)
    tmp = pl.pallas_call(
        _resize_w_kernel,
        grid=(pl.cdiv(M, tm),),
        in_specs=[pl.BlockSpec((tm, Win), lambda i: (i, 0)),
                  pl.BlockSpec((Win, Wout_p), lambda i: (0, 0))],
        out_specs=pl.BlockSpec((tm, Wout_p), lambda i: (i, 0)),
        out_shape=jax.ShapeDtypeStruct((M, Wout_p), jnp.bfloat16),
        compiler_params=pltpu.CompilerParams(
            dimension_semantics=("parallel",), vmem_limit_bytes=_VMEM_LIMIT),
    )(x2, cwt)
    tmp = tmp.reshape(C, Hin, Wout_p)

    tho = Hout_p if Hout_p <= 512 else 512
    out = pl.pallas_call(
        _resize_h_kernel,
        grid=(C, pl.cdiv(Hout_p, tho)),
        in_specs=[pl.BlockSpec((tho, Hin), lambda c, i: (i, 0)),
                  pl.BlockSpec((1, Hin, Wout_p), lambda c, i: (c, 0, 0))],
        out_specs=pl.BlockSpec((1, tho, Wout_p), lambda c, i: (c, i, 0)),
        out_shape=jax.ShapeDtypeStruct((C, Hout_p, Wout_p), jnp.float32),
        compiler_params=pltpu.CompilerParams(
            dimension_semantics=("parallel", "arbitrary"),
            vmem_limit_bytes=_VMEM_LIMIT),
    )(rh, tmp)
    return out


# --------------------------------------------------------------------------
# Kernel 3: per-mask sums over K candidate crops in a single launch
# (offsets in SMEM; rectangular window via iota compares; tiled over masks)
# --------------------------------------------------------------------------
def _crop_sums_kernel(offs_ref, m_ref, o_ref, *, th, tw, k_cand):
    m = m_ref[...]                                   # (TN, Hp, Wp)
    hp, wp = m.shape[1], m.shape[2]
    row_ids = jax.lax.broadcasted_iota(jnp.int32, (hp, wp), 0)
    col_ids = jax.lax.broadcasted_iota(jnp.int32, (hp, wp), 1)
    cols = []
    for k in range(k_cand):                          # K small, bounded unroll
        top = offs_ref[k, 0]
        left = offs_ref[k, 1]
        inside = ((row_ids >= top) & (row_ids < top + th) &
                  (col_ids >= left) & (col_ids < left + tw))
        sel = jnp.where(inside[None, :, :], m, 0.0)
        cols.append(jnp.sum(jnp.sum(sel, axis=2), axis=1, keepdims=True))
    o_ref[...] = jnp.concatenate(cols, axis=1)       # (TN, K)


def crop_candidate_mask_sums(masks, offs, th, tw, k_cand):
    N, Hp, Wp = masks.shape
    tn = N if N <= 8 else 8
    return pl.pallas_call(
        functools.partial(_crop_sums_kernel, th=th, tw=tw, k_cand=k_cand),
        grid=(pl.cdiv(N, tn),),
        in_specs=[pl.BlockSpec(memory_space=pltpu.MemorySpace.SMEM),  # offsets (K, 2)
                  pl.BlockSpec((tn, Hp, Wp), lambda n: (n, 0, 0))],
        out_specs=pl.BlockSpec((tn, k_cand), lambda n: (n, 0)),
        out_shape=jax.ShapeDtypeStruct((N, k_cand), jnp.float32),
        compiler_params=pltpu.CompilerParams(
            dimension_semantics=("parallel",), vmem_limit_bytes=_VMEM_LIMIT),
    )(offs, masks)


# --------------------------------------------------------------------------
# Interpolation-matrix / nearest-index construction (host glue)
# --------------------------------------------------------------------------
def bilinear_antialias_matrix(in_size, out_size, out_pad):
    """PIL/torchvision-style antialiased bilinear weights as a (out_pad, in) matrix
    (rows >= out_size are zero so the padded output rows are exact zeros)."""
    scale = in_size / out_size
    filterscale = max(scale, 1.0)
    support = 1.0 * filterscale
    M = np.zeros((out_pad, in_size), dtype=np.float32)
    for i in range(out_size):
        center = (i + 0.5) * scale
        xmin = max(int(center - support + 0.5), 0)
        xmax = min(int(center + support + 0.5), in_size)
        xs = np.arange(xmin, xmax)
        w = 1.0 - np.abs((xs + 0.5 - center) / filterscale)
        w = np.clip(w, 0.0, None)
        tot = w.sum()
        if tot > 0:
            w = w / tot
        M[i, xmin:xmax] = w
    return M


def nearest_indices(in_size, out_size):
    scale = in_size / out_size
    return np.minimum(np.floor(np.arange(out_size) * scale).astype(np.int64),
                      in_size - 1)


# --------------------------------------------------------------------------
# The Transforms pipeline (host RNG decisions mirror torch.rand branching)
# --------------------------------------------------------------------------
class TransformsPallas:
    def __init__(self, img_size, scale_range, max_brightness_delta=32,
                 max_contrast_factor=0.5, saturation_factor=0.5, max_hue_delta=18):
        self.img_size = img_size
        self.max_brightness_factor = max_brightness_delta / 255.0
        self.max_contrast_factor = max_contrast_factor
        self.max_saturation_factor = saturation_factor
        self.max_hue_delta = max_hue_delta / 360.0
        self.scale_range = scale_range
        self.num_crop_candidates = 8
        self.max_crop_rounds = 8

    def __call__(self, key, img, target):
        keys = jax.random.split(key, 16)

        def coin(k):
            return bool(jax.random.uniform(k, ()) < 0.5)

        def uni(k, lo, hi):
            return float(jax.random.uniform(k, (), minval=lo, maxval=hi))

        # ---- color jitter (skipped op <=> identity factor) ----
        b = uni(keys[1], 1 - self.max_brightness_factor,
                1 + self.max_brightness_factor) if coin(keys[0]) else 1.0
        contrast_first = coin(keys[2])
        c = uni(keys[4], 1 - self.max_contrast_factor,
                1 + self.max_contrast_factor) if coin(keys[3]) else 1.0
        s = uni(keys[6], 1 - self.max_saturation_factor,
                1 + self.max_saturation_factor) if coin(keys[5]) else 1.0
        h = uni(keys[8], -self.max_hue_delta,
                self.max_hue_delta) if coin(keys[7]) else 0.0
        factors = jnp.array([b, c, s, h], dtype=jnp.float32)
        img = color_jitter(img, factors, contrast_first)

        # ---- random horizontal flip (fused into the resize / gather below) ----
        do_flip = coin(keys[9])

        # ---- scale jitter ----
        _, H0, W0 = img.shape
        scale = uni(keys[10], self.scale_range[0], self.scale_range[1])
        # matches torchvision ScaleJitter._get_params
        r = min(self.img_size[1] / H0, self.img_size[0] / W0) * scale
        new_h = max(1, int(H0 * r))
        new_w = max(1, int(W0 * r))
        # output dims padded for full MXU tiles / lane-dense stores; sliced afterwards
        hout_p = _round_up(new_h, 8)
        wout_p = _round_up(new_w, 128)
        # TODO(synk): bucket (H0, W0, new_h, new_w) to a small shape set to avoid
        # per-sample Mosaic recompiles at input-pipeline scale.
        rh_img = bilinear_antialias_matrix(H0, new_h, hout_p)
        cw_img = bilinear_antialias_matrix(W0, new_w, wout_p)
        if do_flip:  # flip input width <=> reverse the input columns of the W matrix
            cw_img = cw_img[:, ::-1]
        cwt_img = np.ascontiguousarray(cw_img.T)           # (W0, wout_p)
        img_rs = resize_image(img, jnp.asarray(rh_img), jnp.asarray(cwt_img))
        img = img_rs[:, :new_h, :new_w]

        # masks: nearest resize is a pure permutation -> static-index gather (glue)
        row_src = nearest_indices(H0, new_h)
        col_src = nearest_indices(W0, new_w)
        if do_flip:
            col_src = (W0 - 1) - col_src
        masks = jnp.take(target['masks'], jnp.asarray(row_src, dtype=jnp.int32), axis=1)
        masks = jnp.take(masks, jnp.asarray(col_src, dtype=jnp.int32), axis=2)
        labels = target['labels']

        # ---- pad (bottom/right zero pad — pure data movement, JAX glue) ----
        th, tw = self.img_size
        pad_h = max(0, th - new_h)
        pad_w = max(0, tw - new_w)
        img = jnp.pad(img, ((0, 0), (0, pad_h), (0, pad_w)))
        masks = jnp.pad(masks, ((0, 0), (0, pad_h), (0, pad_w)))

        # ---- random crop + non-empty-mask filtering: K candidates per launch ----
        _, Hp, Wp = img.shape
        K = self.num_crop_candidates
        found = False
        sums = None
        offs_np = None
        for rnd in range(self.max_crop_rounds):
            ck = jax.random.fold_in(keys[11], rnd)
            kt, kl = jax.random.split(ck)
            tops = jax.random.randint(kt, (K,), 0, Hp - th + 1, dtype=jnp.int32)
            lefts = jax.random.randint(kl, (K,), 0, Wp - tw + 1, dtype=jnp.int32)
            offs = jnp.stack([tops, lefts], axis=1)
            sums = np.asarray(crop_candidate_mask_sums(masks, offs, th, tw, K))
            offs_np = np.asarray(offs)
            nonempty = (sums > 0).any(axis=0)
            if nonempty.any():
                k_sel = int(np.argmax(nonempty))
                found = True
                break
        if not found:
            # TODO(synk): PyTorch recurses until a non-empty crop; bail after K*rounds.
            k_sel = 0

        top = int(offs_np[k_sel, 0])
        left = int(offs_np[k_sel, 1])
        keep = sums[:, k_sel] > 0
        img_c = img[:, top:top + th, left:left + tw]
        masks_c = masks[:, top:top + th, left:left + tw]
        idx = np.nonzero(keep)[0]
        idx_j = jnp.asarray(idx, dtype=jnp.int32)
        masks_c = jnp.take(masks_c, idx_j, axis=0)
        labels_c = jnp.take(labels, idx_j, axis=0)
        return img_c, {'masks': masks_c, 'labels': labels_c}


if __name__ == "__main__":
    key = jax.random.PRNGKey(0)
    k_img, k_rng = jax.random.split(key)

    # deterministic small example: img (3, 24, 24) in [0,1]; 4 rectangular masks
    img = jax.random.uniform(k_img, (3, 24, 24), dtype=jnp.float32)
    masks_np = np.zeros((4, 24, 24), dtype=np.float32)
    masks_np[0, 2:20, 2:20] = 1.0
    masks_np[1, 6:22, 4:18] = 1.0
    masks_np[2, 4:18, 6:22] = 1.0
    masks_np[3, 8:16, 8:16] = 1.0
    target = {'masks': jnp.asarray(masks_np),
              'labels': jnp.arange(1, 5, dtype=jnp.int32)}

    tfm = TransformsPallas(img_size=(16, 16), scale_range=(0.9, 1.3))
    out_img, out_target = tfm(k_rng, img, target)

    jax.block_until_ready(out_img)
    jax.block_until_ready(out_target['masks'])
    jax.block_until_ready(out_target['labels'])
    assert out_img.shape == (3, 16, 16)
    assert out_target['masks'].shape[1:] == (16, 16)
    assert out_target['labels'].shape[0] == out_target['masks'].shape[0]
    print("KERNEL_OK")
</pallas_src>

<mosaic_0001>
module attributes {stable_mosaic.version = 11 : i64} {
  func.func @_color_jitter_kernel(%arg0: i32, %arg1: i32, %arg2: memref<4xf32, #tpu.memory_space<smem>>, %arg3: memref<3x24x24xf32, #tpu.memory_space<vmem>>, %arg4: memref<3x24x24xf32, #tpu.memory_space<vmem>>, %arg5: memref<1x1xf32, #tpu.memory_space<vmem>>) attributes {dimension_semantics = [#tpu.dimension_semantics<arbitrary>, #tpu.dimension_semantics<arbitrary>], iteration_bounds = array<i64: 2, 1>, scalar_prefetch = 0 : i64, scratch_operands = 1 : i64, tpu.core_type = #tpu.core_type<tc>, window_params = [{transform_indices = @transform_0, window_bounds = array<i64: 4>}, {transform_indices = @transform_1, window_bounds = array<i64: 3, 24, 24>}, {transform_indices = @transform_2, window_bounds = array<i64: 3, 24, 24>}]} {
    %c0 = arith.constant 0 : index
    %0 = memref.load %arg2[%c0] : memref<4xf32, #tpu.memory_space<smem>>
    %c1 = arith.constant 1 : index
    %1 = memref.load %arg2[%c1] : memref<4xf32, #tpu.memory_space<smem>>
    %c2 = arith.constant 2 : index
    %2 = memref.load %arg2[%c2] : memref<4xf32, #tpu.memory_space<smem>>
    %c3 = arith.constant 3 : index
    %3 = memref.load %arg2[%c3] : memref<4xf32, #tpu.memory_space<smem>>
    %c0_0 = arith.constant 0 : index
    %c0_1 = arith.constant 0 : index
    %c0_2 = arith.constant 0 : index
    %4 = vector.load %arg3[%c0_0, %c0_1, %c0_2] : memref<3x24x24xf32, #tpu.memory_space<vmem>>, vector<1x24x24xf32>
    %5 = vector.shape_cast %4 : vector<1x24x24xf32> to vector<24x24xf32>
    %6 = vector.broadcast %0 : f32 to vector<24x24xf32>
    %7 = arith.mulf %5, %6 : vector<24x24xf32>
    %cst = arith.constant 0.000000e+00 : f32
    %cst_3 = arith.constant 1.000000e+00 : f32
    %8 = vector.broadcast %cst : f32 to vector<24x24xf32>
    %9 = arith.maximumf %8, %7 : vector<24x24xf32>
    %10 = vector.broadcast %cst_3 : f32 to vector<24x24xf32>
    %11 = arith.minimumf %10, %9 : vector<24x24xf32>
    %c1_4 = arith.constant 1 : index
    %c0_5 = arith.constant 0 : index
    %c0_6 = arith.constant 0 : index
    %12 = vector.load %arg3[%c1_4, %c0_5, %c0_6] : memref<3x24x24xf32, #tpu.memory_space<vmem>>, vector<1x24x24xf32>
    %13 = vector.shape_cast %12 : vector<1x24x24xf32> to vector<24x24xf32>
    %14 = vector.broadcast %0 : f32 to vector<24x24xf32>
    %15 = arith.mulf %13, %14 : vector<24x24xf32>
    %cst_7 = arith.constant 0.000000e+00 : f32
    %cst_8 = arith.constant 1.000000e+00 : f32
    %16 = vector.broadcast %cst_7 : f32 to vector<24x24xf32>
    %17 = arith.maximumf %16, %15 : vector<24x24xf32>
    %18 = vector.broadcast %cst_8 : f32 to vector<24x24xf32>
    %19 = arith.minimumf %18, %17 : vector<24x24xf32>
    %c2_9 = arith.constant 2 : index
    %c0_10 = arith.constant 0 : index
    %c0_11 = arith.constant 0 : index
    %20 = vector.load %arg3[%c2_9, %c0_10, %c0_11] : memref<3x24x24xf32, #tpu.memory_space<vmem>>, vector<1x24x24xf32>
    %21 = vector.shape_cast %20 : vector<1x24x24xf32> to vector<24x24xf32>
    %22 = vector.broadcast %0 : f32 to vector<24x24xf32>
    %23 = arith.mulf %21, %22 : vector<24x24xf32>
    %cst_12 = arith.constant 0.000000e+00 : f32
    %cst_13 = arith.constant 1.000000e+00 : f32
    %24 = vector.broadcast %cst_12 : f32 to vector<24x24xf32>
    %25 = arith.maximumf %24, %23 : vector<24x24xf32>
    %26 = vector.broadcast %cst_13 : f32 to vector<24x24xf32>
    %27 = arith.minimumf %26, %25 : vector<24x24xf32>
    %c0_i32 = arith.constant 0 : i32
    %28 = arith.cmpi eq, %arg0, %c0_i32 : i32
    %c0_i32_14 = arith.constant 0 : i32
    %29 = arith.cmpi eq, %arg1, %c0_i32_14 : i32
    %30 = arith.andi %28, %29 : i1
    %31 = arith.extui %30 : i1 to i32
    %c0_i32_15 = arith.constant 0 : i32
    %32 = arith.cmpi ne, %31, %c0_i32_15 : i32
    scf.if %32 {
      %cst_19 = arith.constant 0.000000e+00 : f32
      %39 = vector.broadcast %cst_19 : f32 to vector<1x1xf32>
      %c0_20 = arith.constant 0 : index
      %c0_21 = arith.constant 0 : index
      %40 = vector.load %arg5[%c0_20, %c0_21] : memref<1x1xf32, #tpu.memory_space<vmem>>, vector<1x1xf32>
      tpu.vector_store %arg5[%c0_20, %c0_21], %39 {strides = array<i32>} : memref<1x1xf32, #tpu.memory_space<vmem>>, vector<1x1xf32>,
    } else {
    }
    %c0_i32_16 = arith.constant 0 : i32
    %33 = arith.cmpi eq, %arg0, %c0_i32_16 : i32
    %34 = arith.extui %33 : i1 to i32
    %c0_i32_17 = arith.constant 0 : i32
    %35 = arith.cmpi ne, %34, %c0_i32_17 : i32
    scf.if %35 {
      %cst_19 = arith.constant 2.989000e-01 : f32
      %39 = vector.broadcast %cst_19 : f32 to vector<24x24xf32>
      %40 = arith.mulf %39, %11 : vector<24x24xf32>
      %cst_20 = arith.constant 5.870000e-01 : f32
      %41 = vector.broadcast %cst_20 : f32 to vector<24x24xf32>
      %42 = arith.mulf %41, %19 : vector<24x24xf32>
      %43 = arith.addf %40, %42 : vector<24x24xf32>
      %cst_21 = arith.constant 1.140000e-01 : f32
      %44 = vector.broadcast %cst_21 : f32 to vector<24x24xf32>
      %45 = arith.mulf %44, %27 : vector<24x24xf32>
      %46 = arith.addf %43, %45 : vector<24x24xf32>
      %47 = vector.broadcast %2 : f32 to vector<24x24xf32>
      %48 = arith.mulf %47, %11 : vector<24x24xf32>
      %cst_22 = arith.constant 1.000000e+00 : f32
      %49 = arith.subf %cst_22, %2 : f32
      %50 = vector.broadcast %49 : f32 to vector<24x24xf32>
      %51 = arith.mulf %50, %46 : vector<24x24xf32>
      %52 = arith.addf %48, %51 : vector<24x24xf32>
      %cst_23 = arith.constant 0.000000e+00 : f32
      %cst_24 = arith.constant 1.000000e+00 : f32
      %53 = vector.broadcast %cst_23 : f32 to vector<24x24xf32>
      %54 = arith.maximumf %53, %52 : vector<24x24xf32>
      %55 = vector.broadcast %cst_24 : f32 to vector<24x24xf32>
      %56 = arith.minimumf %55, %54 : vector<24x24xf32>
      %57 = vector.broadcast %2 : f32 to vector<24x24xf32>
      %58 = arith.mulf %57, %19 : vector<24x24xf32>
      %cst_25 = arith.constant 1.000000e+00 : f32
      %59 = arith.subf %cst_25, %2 : f32
      %60 = vector.broadcast %59 : f32 to vector<24x24xf32>
      %61 = arith.mulf %60, %46 : vector<24x24xf32>
      %62 = arith.addf %58, %61 : vector<24x24xf32>
      %cst_26 = arith.constant 0.000000e+00 : f32
      %cst_27 = arith.constant 1.000000e+00 : f32
      %63 = vector.broadcast %cst_26 : f32 to vector<24x24xf32>
      %64 = arith.maximumf %63, %62 : vector<24x24xf32>
      %65 = vector.broadcast %cst_27 : f32 to vector<24x24xf32>
      %66 = arith.minimumf %65, %64 : vector<24x24xf32>
      %67 = vector.broadcast %2 : f32 to vector<24x24xf32>
      %68 = arith.mulf %67, %27 : vector<24x24xf32>
      %cst_28 = arith.constant 1.000000e+00 : f32
      %69 = arith.subf %cst_28, %2 : f32
      %70 = vector.broadcast %69 : f32 to vector<24x24xf32>
      %71 = arith.mulf %70, %46 : vector<24x24xf32>
      %72 = arith.addf %68, %71 : vector<24x24xf32>
      %cst_29 = arith.constant 0.000000e+00 : f32
      %cst_30 = arith.constant 1.000000e+00 : f32
      %73 = vector.broadcast %cst_29 : f32 to vector<24x24xf32>
      %74 = arith.maximumf %73, %72 : vector<24x24xf32>
      %75 = vector.broadcast %cst_30 : f32 to vector<24x24xf32>
      %76 = arith.minimumf %75, %74 : vector<24x24xf32>
      %77 = arith.maximumf %56, %66 : vector<24x24xf32>
      %78 = arith.maximumf %77, %76 : vector<24x24xf32>
      %79 = arith.minimumf %56, %66 : vector<24x24xf32>
      %80 = arith.minimumf %79, %76 : vector<24x24xf32>
      %81 = arith.cmpf oeq, %78, %80 : vector<24x24xf32>
      %82 = arith.subf %78, %80 : vector<24x24xf32>
      %cst_31 = arith.constant 1.000000e+00 : f32
      %83 = vector.broadcast %cst_31 : f32 to vector<24x24xf32>
      %84 = arith.select %81, %83, %78 : vector<24x24xi1>, vector<24x24xf32>
      %85 = tpu.reciprocal %84 {approx = true} : vector<24x24xf32> -> vector<24x24xf32>
      %86 = arith.mulf %82, %85 : vector<24x24xf32>
      %87 = arith.select %81, %83, %82 : vector<24x24xi1>, vector<24x24xf32>
      %88 = tpu.reciprocal %87 {approx = true} : vector<24x24xf32> -> vector<24x24xf32>
      %89 = arith.subf %78, %56 : vector<24x24xf32>
      %90 = arith.mulf %89, %88 : vector<24x24xf32>
      %91 = arith.subf %78, %66 : vector<24x24xf32>
      %92 = arith.mulf %91, %88 : vector<24x24xf32>
      %93 = arith.subf %78, %76 : vector<24x24xf32>
      %94 = arith.mulf %93, %88 : vector<24x24xf32>
      %95 = arith.cmpf oeq, %78, %56 : vector<24x24xf32>
      %96 = arith.subf %94, %92 : vector<24x24xf32>
      %cst_32 = arith.constant 0.000000e+00 : f32
      %97 = vector.broadcast %cst_32 : f32 to vector<24x24xf32>
      %98 = arith.select %95, %96, %97 : vector<24x24xi1>, vector<24x24xf32>
      %99 = arith.cmpf oeq, %78, %66 : vector<24x24xf32>
      %100 = arith.cmpf one, %78, %56 : vector<24x24xf32>
      %101 = arith.andi %99, %100 : vector<24x24xi1>
      %cst_33 = arith.constant 2.000000e+00 : f32
      %102 = vector.broadcast %cst_33 : f32 to vector<24x24xf32>
      %103 = arith.addf %102, %90 : vector<24x24xf32>
      %104 = arith.subf %103, %94 : vector<24x24xf32>
      %cst_34 = arith.constant 0.000000e+00 : f32
      %105 = vector.broadcast %cst_34 : f32 to vector<24x24xf32>
      %106 = arith.select %101, %104, %105 : vector<24x24xi1>, vector<24x24xf32>
      %107 = arith.cmpf one, %78, %66 : vector<24x24xf32>
      %108 = arith.cmpf one, %78, %56 : vector<24x24xf32>
      %109 = arith.andi %107, %108 : vector<24x24xi1>
      %cst_35 = arith.constant 4.000000e+00 : f32
      %110 = vector.broadcast %cst_35 : f32 to vector<24x24xf32>
      %111 = arith.addf %110, %92 : vector<24x24xf32>
      %112 = arith.subf %111, %90 : vector<24x24xf32>
      %cst_36 = arith.constant 0.000000e+00 : f32
      %113 = vector.broadcast %cst_36 : f32 to vector<24x24xf32>
      %114 = arith.select %109, %112, %113 : vector<24x24xi1>, vector<24x24xf32>
      %115 = arith.addf %98, %106 : vector<24x24xf32>
      %116 = arith.addf %115, %114 : vector<24x24xf32>
      %cst_37 = arith.constant 0.166666672 : f32
      %117 = vector.broadcast %cst_37 : f32 to vector<24x24xf32>
      %118 = arith.mulf %116, %117 : vector<24x24xf32>
      %cst_38 = arith.constant 1.000000e+00 : f32
      %119 = vector.broadcast %cst_38 : f32 to vector<24x24xf32>
      %120 = arith.addf %118, %119 : vector<24x24xf32>
      %121 = math.floor %120 : vector<24x24xf32>
      %122 = arith.subf %120, %121 : vector<24x24xf32>
      %123 = vector.broadcast %3 : f32 to vector<24x24xf32>
      %124 = arith.addf %122, %123 : vector<24x24xf32>
      %125 = math.floor %124 : vector<24x24xf32>
      %126 = arith.subf %124, %125 : vector<24x24xf32>
      %cst_39 = arith.constant 6.000000e+00 : f32
      %127 = vector.broadcast %cst_39 : f32 to vector<24x24xf32>
      %128 = arith.mulf %126, %127 : vector<24x24xf32>
      %129 = math.floor %128 : vector<24x24xf32>
      %130 = arith.subf %128, %129 : vector<24x24xf32>
      %131 = arith.fptosi %129 : vector<24x24xf32> to vector<24x24xi32>
      %c5_i32 = arith.constant 5 : i32
      %132 = vector.broadcast %c5_i32 : i32 to vector<24x24xi32>
      %133 = arith.minsi %131, %132 : vector<24x24xi32>
      %cst_40 = arith.constant 1.000000e+00 : f32
      %134 = vector.broadcast %cst_40 : f32 to vector<24x24xf32>
      %135 = arith.subf %134, %86 : vector<24x24xf32>
      %136 = arith.mulf %78, %135 : vector<24x24xf32>
      %cst_41 = arith.constant 0.000000e+00 : f32
      %cst_42 = arith.constant 1.000000e+00 : f32
      %137 = vector.broadcast %cst_41 : f32 to vector<24x24xf32>
      %138 = arith.maximumf %137, %136 : vector<24x24xf32>
      %139 = vector.broadcast %cst_42 : f32 to vector<24x24xf32>
      %140 = arith.minimumf %139, %138 : vector<24x24xf32>
      %141 = arith.mulf %86, %130 : vector<24x24xf32>
      %cst_43 = arith.constant 1.000000e+00 : f32
      %142 = vector.broadcast %cst_43 : f32 to vector<24x24xf32>
      %143 = arith.subf %142, %141 : vector<24x24xf32>
      %144 = arith.mulf %78, %143 : vector<24x24xf32>
      %cst_44 = arith.constant 0.000000e+00 : f32
      %cst_45 = arith.constant 1.000000e+00 : f32
      %145 = vector.broadcast %cst_44 : f32 to vector<24x24xf32>
      %146 = arith.maximumf %145, %144 : vector<24x24xf32>
      %147 = vector.broadcast %cst_45 : f32 to vector<24x24xf32>
      %148 = arith.minimumf %147, %146 : vector<24x24xf32>
      %cst_46 = arith.constant 1.000000e+00 : f32
      %149 = vector.broadcast %cst_46 : f32 to vector<24x24xf32>
      %150 = arith.subf %149, %130 : vector<24x24xf32>
      %151 = arith.mulf %86, %150 : vector<24x24xf32>
      %cst_47 = arith.constant 1.000000e+00 : f32
      %152 = vector.broadcast %cst_47 : f32 to vector<24x24xf32>
      %153 = arith.subf %152, %151 : vector<24x24xf32>
      %154 = arith.mulf %78, %153 : vector<24x24xf32>
      %cst_48 = arith.constant 0.000000e+00 : f32
      %cst_49 = arith.constant 1.000000e+00 : f32
      %155 = vector.broadcast %cst_48 : f32 to vector<24x24xf32>
      %156 = arith.maximumf %155, %154 : vector<24x24xf32>
      %157 = vector.broadcast %cst_49 : f32 to vector<24x24xf32>
      %158 = arith.minimumf %157, %156 : vector<24x24xf32>
      %c0_i32_50 = arith.constant 0 : i32
      %159 = vector.broadcast %c0_i32_50 : i32 to vector<24x24xi32>
      %160 = arith.cmpi eq, %133, %159 : vector<24x24xi32>
      %161 = arith.select %160, %78, %78 : vector<24x24xi1>, vector<24x24xf32>
      %c1_i32_51 = arith.constant 1 : i32
      %162 = vector.broadcast %c1_i32_51 : i32 to vector<24x24xi32>
      %163 = arith.cmpi eq, %133, %162 : vector<24x24xi32>
      %164 = arith.select %163, %148, %161 : vector<24x24xi1>, vector<24x24xf32>
      %c2_i32 = arith.constant 2 : i32
      %165 = vector.broadcast %c2_i32 : i32 to vector<24x24xi32>
      %166 = arith.cmpi eq, %133, %165 : vector<24x24xi32>
      %167 = arith.select %166, %140, %164 : vector<24x24xi1>, vector<24x24xf32>
      %c3_i32 = arith.constant 3 : i32
      %168 = vector.broadcast %c3_i32 : i32 to vector<24x24xi32>
      %169 = arith.cmpi eq, %133, %168 : vector<24x24xi32>
      %170 = arith.select %169, %140, %167 : vector<24x24xi1>, vector<24x24xf32>
      %c4_i32 = arith.constant 4 : i32
      %171 = vector.broadcast %c4_i32 : i32 to vector<24x24xi32>
      %172 = arith.cmpi eq, %133, %171 : vector<24x24xi32>
      %173 = arith.select %172, %158, %170 : vector<24x24xi1>, vector<24x24xf32>
      %c0_i32_52 = arith.constant 0 : i32
      %174 = vector.broadcast %c0_i32_52 : i32 to vector<24x24xi32>
      %175 = arith.cmpi eq, %133, %174 : vector<24x24xi32>
      %176 = arith.select %175, %158, %140 : vector<24x24xi1>, vector<24x24xf32>
      %c1_i32_53 = arith.constant 1 : i32
      %177 = vector.broadcast %c1_i32_53 : i32 to vector<24x24xi32>
      %178 = arith.cmpi eq, %133, %177 : vector<24x24xi32>
      %179 = arith.select %178, %78, %176 : vector<24x24xi1>, vector<24x24xf32>
      %c2_i32_54 = arith.constant 2 : i32
      %180 = vector.broadcast %c2_i32_54 : i32 to vector<24x24xi32>
      %181 = arith.cmpi eq, %133, %180 : vector<24x24xi32>
      %182 = arith.select %181, %78, %179 : vector<24x24xi1>, vector<24x24xf32>
      %c3_i32_55 = arith.constant 3 : i32
      %183 = vector.broadcast %c3_i32_55 : i32 to vector<24x24xi32>
      %184 = arith.cmpi eq, %133, %183 : vector<24x24xi32>
      %185 = arith.select %184, %148, %182 : vector<24x24xi1>, vector<24x24xf32>
      %c4_i32_56 = arith.constant 4 : i32
      %186 = vector.broadcast %c4_i32_56 : i32 to vector<24x24xi32>
      %187 = arith.cmpi eq, %133, %186 : vector<24x24xi32>
      %188 = arith.select %187, %140, %185 : vector<24x24xi1>, vector<24x24xf32>
      %c0_i32_57 = arith.constant 0 : i32
      %189 = vector.broadcast %c0_i32_57 : i32 to vector<24x24xi32>
      %190 = arith.cmpi eq, %133, %189 : vector<24x24xi32>
      %191 = arith.select %190, %140, %148 : vector<24x24xi1>, vector<24x24xf32>
      %c1_i32_58 = arith.constant 1 : i32
      %192 = vector.broadcast %c1_i32_58 : i32 to vector<24x24xi32>
      %193 = arith.cmpi eq, %133, %192 : vector<24x24xi32>
      %194 = arith.select %193, %140, %191 : vector<24x24xi1>, vector<24x24xf32>
      %c2_i32_59 = arith.constant 2 : i32
      %195 = vector.broadcast %c2_i32_59 : i32 to vector<24x24xi32>
      %196 = arith.cmpi eq, %133, %195 : vector<24x24xi32>
      %197 = arith.select %196, %158, %194 : vector<24x24xi1>, vector<24x24xf32>
      %c3_i32_60 = arith.constant 3 : i32
      %198 = vector.broadcast %c3_i32_60 : i32 to vector<24x24xi32>
      %199 = arith.cmpi eq, %133, %198 : vector<24x24xi32>
      %200 = arith.select %199, %78, %197 : vector<24x24xi1>, vector<24x24xf32>
      %c4_i32_61 = arith.constant 4 : i32
      %201 = vector.broadcast %c4_i32_61 : i32 to vector<24x24xi32>
      %202 = arith.cmpi eq, %133, %201 : vector<24x24xi32>
      %203 = arith.select %202, %78, %200 : vector<24x24xi1>, vector<24x24xf32>
      %cst_62 = arith.constant 2.989000e-01 : f32
      %204 = vector.broadcast %cst_62 : f32 to vector<24x24xf32>
      %205 = arith.mulf %204, %173 : vector<24x24xf32>
      %cst_63 = arith.constant 5.870000e-01 : f32
      %206 = vector.broadcast %cst_63 : f32 to vector<24x24xf32>
      %207 = arith.mulf %206, %188 : vector<24x24xf32>
      %208 = arith.addf %205, %207 : vector<24x24xf32>
      %cst_64 = arith.constant 1.140000e-01 : f32
      %209 = vector.broadcast %cst_64 : f32 to vector<24x24xf32>
      %210 = arith.mulf %209, %203 : vector<24x24xf32>
      %211 = arith.addf %208, %210 : vector<24x24xf32>
      %c0_65 = arith.constant 0 : index
      %c0_66 = arith.constant 0 : index
      %212 = vector.load %arg5[%c0_65, %c0_66] : memref<1x1xf32, #tpu.memory_space<vmem>>, vector<1x1xf32>
      %213 = vector.shape_cast %211 : vector<24x24xf32> to vector<1x24x24xf32>
      %cst_67 = arith.constant dense<0.000000e+00> : vector<1xf32>
      %214 = vector.multi_reduction <add>, %213, %cst_67 [1, 2] : vector<1x24x24xf32> to vector<1xf32>
      %215 = vector.shape_cast %214 : vector<1xf32> to vector<1x1x1xf32>
      %216 = vector.extract %215[0, 0, 0] : f32 from vector<1x1x1xf32>
      %217 = vector.broadcast %216 : f32 to vector<1x1xf32>
      %218 = arith.addf %212, %217 : vector<1x1xf32>
      %c0_68 = arith.constant 0 : index
      %c0_69 = arith.constant 0 : index
      %219 = vector.load %arg5[%c0_68, %c0_69] : memref<1x1xf32, #tpu.memory_space<vmem>>, vector<1x1xf32>
      tpu.vector_store %arg5[%c0_68, %c0_69], %218 {strides = array<i32>} : memref<1x1xf32, #tpu.memory_space<vmem>>, vector<1x1xf32>,
    } else {
    }
    %c1_i32 = arith.constant 1 : i32
    %36 = arith.cmpi eq, %arg0, %c1_i32 : i32
    %37 = arith.extui %36 : i1 to i32
    %c0_i32_18 = arith.constant 0 : i32
    %38 = arith.cmpi ne, %37, %c0_i32_18 : i32
    scf.if %38 {
      %c0_19 = arith.constant 0 : index
      %c0_20 = arith.constant 0 : index
      %39 = vector.load %arg5[%c0_19, %c0_20] : memref<1x1xf32, #tpu.memory_space<vmem>>, vector<1x1xf32>
      %cst_21 = arith.constant 0.00173611112 : f32
      %40 = vector.broadcast %cst_21 : f32 to vector<1x1xf32>
      %41 = arith.mulf %39, %40 : vector<1x1xf32>
      %cst_22 = arith.constant 2.989000e-01 : f32
      %42 = vector.broadcast %cst_22 : f32 to vector<24x24xf32>
      %43 = arith.mulf %42, %11 : vector<24x24xf32>
      %cst_23 = arith.constant 5.870000e-01 : f32
      %44 = vector.broadcast %cst_23 : f32 to vector<24x24xf32>
      %45 = arith.mulf %44, %19 : vector<24x24xf32>
      %46 = arith.addf %43, %45 : vector<24x24xf32>
      %cst_24 = arith.constant 1.140000e-01 : f32
      %47 = vector.broadcast %cst_24 : f32 to vector<24x24xf32>
      %48 = arith.mulf %47, %27 : vector<24x24xf32>
      %49 = arith.addf %46, %48 : vector<24x24xf32>
      %50 = vector.broadcast %2 : f32 to vector<24x24xf32>
      %51 = arith.mulf %50, %11 : vector<24x24xf32>
      %cst_25 = arith.constant 1.000000e+00 : f32
      %52 = arith.subf %cst_25, %2 : f32
      %53 = vector.broadcast %52 : f32 to vector<24x24xf32>
      %54 = arith.mulf %53, %49 : vector<24x24xf32>
      %55 = arith.addf %51, %54 : vector<24x24xf32>
      %cst_26 = arith.constant 0.000000e+00 : f32
      %cst_27 = arith.constant 1.000000e+00 : f32
      %56 = vector.broadcast %cst_26 : f32 to vector<24x24xf32>
      %57 = arith.maximumf %56, %55 : vector<24x24xf32>
      %58 = vector.broadcast %cst_27 : f32 to vector<24x24xf32>
      %59 = arith.minimumf %58, %57 : vector<24x24xf32>
      %60 = vector.broadcast %2 : f32 to vector<24x24xf32>
      %61 = arith.mulf %60, %19 : vector<24x24xf32>
      %cst_28 = arith.constant 1.000000e+00 : f32
      %62 = arith.subf %cst_28, %2 : f32
      %63 = vector.broadcast %62 : f32 to vector<24x24xf32>
      %64 = arith.mulf %63, %49 : vector<24x24xf32>
      %65 = arith.addf %61, %64 : vector<24x24xf32>
      %cst_29 = arith.constant 0.000000e+00 : f32
      %cst_30 = arith.constant 1.000000e+00 : f32
      %66 = vector.broadcast %cst_29 : f32 to vector<24x24xf32>
      %67 = arith.maximumf %66, %65 : vector<24x24xf32>
      %68 = vector.broadcast %cst_30 : f32 to vector<24x24xf32>
      %69 = arith.minimumf %68, %67 : vector<24x24xf32>
      %70 = vector.broadcast %2 : f32 to vector<24x24xf32>
      %71 = arith.mulf %70, %27 : vector<24x24xf32>
      %cst_31 = arith.constant 1.000000e+00 : f32
      %72 = arith.subf %cst_31, %2 : f32
      %73 = vector.broadcast %72 : f32 to vector<24x24xf32>
      %74 = arith.mulf %73, %49 : vector<24x24xf32>
      %75 = arith.addf %71, %74 : vector<24x24xf32>
      %cst_32 = arith.constant 0.000000e+00 : f32
      %cst_33 = arith.constant 1.000000e+00 : f32
      %76 = vector.broadcast %cst_32 : f32 to vector<24x24xf32>
      %77 = arith.maximumf %76, %75 : vector<24x24xf32>
      %78 = vector.broadcast %cst_33 : f32 to vector<24x24xf32>
      %79 = arith.minimumf %78, %77 : vector<24x24xf32>
      %80 = arith.maximumf %59, %69 : vector<24x24xf32>
      %81 = arith.maximumf %80, %79 : vector<24x24xf32>
      %82 = arith.minimumf %59, %69 : vector<24x24xf32>
      %83 = arith.minimumf %82, %79 : vector<24x24xf32>
      %84 = arith.cmpf oeq, %81, %83 : vector<24x24xf32>
      %85 = arith.subf %81, %83 : vector<24x24xf32>
      %cst_34 = arith.constant 1.000000e+00 : f32
      %86 = vector.broadcast %cst_34 : f32 to vector<24x24xf32>
      %87 = arith.select %84, %86, %81 : vector<24x24xi1>, vector<24x24xf32>
      %88 = tpu.reciprocal %87 {approx = true} : vector<24x24xf32> -> vector<24x24xf32>
      %89 = arith.mulf %85, %88 : vector<24x24xf32>
      %90 = arith.select %84, %86, %85 : vector<24x24xi1>, vector<24x24xf32>
      %91 = tpu.reciprocal %90 {approx = true} : vector<24x24xf32> -> vector<24x24xf32>
      %92 = arith.subf %81, %59 : vector<24x24xf32>
      %93 = arith.mulf %92, %91 : vector<24x24xf32>
      %94 = arith.subf %81, %69 : vector<24x24xf32>
      %95 = arith.mulf %94, %91 : vector<24x24xf32>
      %96 = arith.subf %81, %79 : vector<24x24xf32>
      %97 = arith.mulf %96, %91 : vector<24x24xf32>
      %98 = arith.cmpf oeq, %81, %59 : vector<24x24xf32>
      %99 = arith.subf %97, %95 : vector<24x24xf32>
      %cst_35 = arith.constant 0.000000e+00 : f32
      %100 = vector.broadcast %cst_35 : f32 to vector<24x24xf32>
      %101 = arith.select %98, %99, %100 : vector<24x24xi1>, vector<24x24xf32>
      %102 = arith.cmpf oeq, %81, %69 : vector<24x24xf32>
      %103 = arith.cmpf one, %81, %59 : vector<24x24xf32>
      %104 = arith.andi %102, %103 : vector<24x24xi1>
      %cst_36 = arith.constant 2.000000e+00 : f32
      %105 = vector.broadcast %cst_36 : f32 to vector<24x24xf32>
      %106 = arith.addf %105, %93 : vector<24x24xf32>
      %107 = arith.subf %106, %97 : vector<24x24xf32>
      %cst_37 = arith.constant 0.000000e+00 : f32
      %108 = vector.broadcast %cst_37 : f32 to vector<24x24xf32>
      %109 = arith.select %104, %107, %108 : vector<24x24xi1>, vector<24x24xf32>
      %110 = arith.cmpf one, %81, %69 : vector<24x24xf32>
      %111 = arith.cmpf one, %81, %59 : vector<24x24xf32>
      %112 = arith.andi %110, %111 : vector<24x24xi1>
      %cst_38 = arith.constant 4.000000e+00 : f32
      %113 = vector.broadcast %cst_38 : f32 to vector<24x24xf32>
      %114 = arith.addf %113, %95 : vector<24x24xf32>
      %115 = arith.subf %114, %93 : vector<24x24xf32>
      %cst_39 = arith.constant 0.000000e+00 : f32
      %116 = vector.broadcast %cst_39 : f32 to vector<24x24xf32>
      %117 = arith.select %112, %115, %116 : vector<24x24xi1>, vector<24x24xf32>
      %118 = arith.addf %101, %109 : vector<24x24xf32>
      %119 = arith.addf %118, %117 : vector<24x24xf32>
      %cst_40 = arith.constant 0.166666672 : f32
      %120 = vector.broadcast %cst_40 : f32 to vector<24x24xf32>
      %121 = arith.mulf %119, %120 : vector<24x24xf32>
      %cst_41 = arith.constant 1.000000e+00 : f32
      %122 = vector.broadcast %cst_41 : f32 to vector<24x24xf32>
      %123 = arith.addf %121, %122 : vector<24x24xf32>
      %124 = math.floor %123 : vector<24x24xf32>
      %125 = arith.subf %123, %124 : vector<24x24xf32>
      %126 = vector.broadcast %3 : f32 to vector<24x24xf32>
      %127 = arith.addf %125, %126 : vector<24x24xf32>
      %128 = math.floor %127 : vector<24x24xf32>
      %129 = arith.subf %127, %128 : vector<24x24xf32>
      %cst_42 = arith.constant 6.000000e+00 : f32
      %130 = vector.broadcast %cst_42 : f32 to vector<24x24xf32>
      %131 = arith.mulf %129, %130 : vector<24x24xf32>
      %132 = math.floor %131 : vector<24x24xf32>
      %133 = arith.subf %131, %132 : vector<24x24xf32>
      %134 = arith.fptosi %132 : vector<24x24xf32> to vector<24x24xi32>
      %c5_i32 = arith.constant 5 : i32
      %135 = vector.broadcast %c5_i32 : i32 to vector<24x24xi32>
      %136 = arith.minsi %134, %135 : vector<24x24xi32>
      %cst_43 = arith.constant 1.000000e+00 : f32
      %137 = vector.broadcast %cst_43 : f32 to vector<24x24xf32>
      %138 = arith.subf %137, %89 : vector<24x24xf32>
      %139 = arith.mulf %81, %138 : vector<24x24xf32>
      %cst_44 = arith.constant 0.000000e+00 : f32
      %cst_45 = arith.constant 1.000000e+00 : f32
      %140 = vector.broadcast %cst_44 : f32 to vector<24x24xf32>
      %141 = arith.maximumf %140, %139 : vector<24x24xf32>
      %142 = vector.broadcast %cst_45 : f32 to vector<24x24xf32>
      %143 = arith.minimumf %142, %141 : vector<24x24xf32>
      %144 = arith.mulf %89, %133 : vector<24x24xf32>
      %cst_46 = arith.constant 1.000000e+00 : f32
      %145 = vector.broadcast %cst_46 : f32 to vector<24x24xf32>
      %146 = arith.subf %145, %144 : vector<24x24xf32>
      %147 = arith.mulf %81, %146 : vector<24x24xf32>
      %cst_47 = arith.constant 0.000000e+00 : f32
      %cst_48 = arith.constant 1.000000e+00 : f32
      %148 = vector.broadcast %cst_47 : f32 to vector<24x24xf32>
      %149 = arith.maximumf %148, %147 : vector<24x24xf32>
      %150 = vector.broadcast %cst_48 : f32 to vector<24x24xf32>
      %151 = arith.minimumf %150, %149 : vector<24x24xf32>
      %cst_49 = arith.constant 1.000000e+00 : f32
      %152 = vector.broadcast %cst_49 : f32 to vector<24x24xf32>
      %153 = arith.subf %152, %133 : vector<24x24xf32>
      %154 = arith.mulf %89, %153 : vector<24x24xf32>
      %cst_50 = arith.constant 1.000000e+00 : f32
      %155 = vector.broadcast %cst_50 : f32 to vector<24x24xf32>
      %156 = arith.subf %155, %154 : vector<24x24xf32>
      %157 = arith.mulf %81, %156 : vector<24x24xf32>
      %cst_51 = arith.constant 0.000000e+00 : f32
      %cst_52 = arith.constant 1.000000e+00 : f32
      %158 = vector.broadcast %cst_51 : f32 to vector<24x24xf32>
      %159 = arith.maximumf %158, %157 : vector<24x24xf32>
      %160 = vector.broadcast %cst_52 : f32 to vector<24x24xf32>
      %161 = arith.minimumf %160, %159 : vector<24x24xf32>
      %c0_i32_53 = arith.constant 0 : i32
      %162 = vector.broadcast %c0_i32_53 : i32 to vector<24x24xi32>
      %163 = arith.cmpi eq, %136, %162 : vector<24x24xi32>
      %164 = arith.select %163, %81, %81 : vector<24x24xi1>, vector<24x24xf32>
      %c1_i32_54 = arith.constant 1 : i32
      %165 = vector.broadcast %c1_i32_54 : i32 to vector<24x24xi32>
      %166 = arith.cmpi eq, %136, %165 : vector<24x24xi32>
      %167 = arith.select %166, %151, %164 : vector<24x24xi1>, vector<24x24xf32>
      %c2_i32 = arith.constant 2 : i32
      %168 = vector.broadcast %c2_i32 : i32 to vector<24x24xi32>
      %169 = arith.cmpi eq, %136, %168 : vector<24x24xi32>
      %170 = arith.select %169, %143, %167 : vector<24x24xi1>, vector<24x24xf32>
      %c3_i32 = arith.constant 3 : i32
      %171 = vector.broadcast %c3_i32 : i32 to vector<24x24xi32>
      %172 = arith.cmpi eq, %136, %171 : vector<24x24xi32>
      %173 = arith.select %172, %143, %170 : vector<24x24xi1>, vector<24x24xf32>
      %c4_i32 = arith.constant 4 : i32
      %174 = vector.broadcast %c4_i32 : i32 to vector<24x24xi32>
      %175 = arith.cmpi eq, %136, %174 : vector<24x24xi32>
      %176 = arith.select %175, %161, %173 : vector<24x24xi1>, vector<24x24xf32>
      %c0_i32_55 = arith.constant 0 : i32
      %177 = vector.broadcast %c0_i32_55 : i32 to vector<24x24xi32>
      %178 = arith.cmpi eq, %136, %177 : vector<24x24xi32>
      %179 = arith.select %178, %161, %143 : vector<24x24xi1>, vector<24x24xf32>
      %c1_i32_56 = arith.constant 1 : i32
      %180 = vector.broadcast %c1_i32_56 : i32 to vector<24x24xi32>
      %181 = arith.cmpi eq, %136, %180 : vector<24x24xi32>
      %182 = arith.select %181, %81, %179 : vector<24x24xi1>, vector<24x24xf32>
      %c2_i32_57 = arith.constant 2 : i32
      %183 = vector.broadcast %c2_i32_57 : i32 to vector<24x24xi32>
      %184 = arith.cmpi eq, %136, %183 : vector<24x24xi32>
      %185 = arith.select %184, %81, %182 : vector<24x24xi1>, vector<24x24xf32>
      %c3_i32_58 = arith.constant 3 : i32
      %186 = vector.broadcast %c3_i32_58 : i32 to vector<24x24xi32>
      %187 = arith.cmpi eq, %136, %186 : vector<24x24xi32>
      %188 = arith.select %187, %151, %185 : vector<24x24xi1>, vector<24x24xf32>
      %c4_i32_59 = arith.constant 4 : i32
      %189 = vector.broadcast %c4_i32_59 : i32 to vector<24x24xi32>
      %190 = arith.cmpi eq, %136, %189 : vector<24x24xi32>
      %191 = arith.select %190, %143, %188 : vector<24x24xi1>, vector<24x24xf32>
      %c0_i32_60 = arith.constant 0 : i32
      %192 = vector.broadcast %c0_i32_60 : i32 to vector<24x24xi32>
      %193 = arith.cmpi eq, %136, %192 : vector<24x24xi32>
      %194 = arith.select %193, %143, %151 : vector<24x24xi1>, vector<24x24xf32>
      %c1_i32_61 = arith.constant 1 : i32
      %195 = vector.broadcast %c1_i32_61 : i32 to vector<24x24xi32>
      %196 = arith.cmpi eq, %136, %195 : vector<24x24xi32>
      %197 = arith.select %196, %143, %194 : vector<24x24xi1>, vector<24x24xf32>
      %c2_i32_62 = arith.constant 2 : i32
      %198 = vector.broadcast %c2_i32_62 : i32 to vector<24x24xi32>
      %199 = arith.cmpi eq, %136, %198 : vector<24x24xi32>
      %200 = arith.select %199, %161, %197 : vector<24x24xi1>, vector<24x24xf32>
      %c3_i32_63 = arith.constant 3 : i32
      %201 = vector.broadcast %c3_i32_63 : i32 to vector<24x24xi32>
      %202 = arith.cmpi eq, %136, %201 : vector<24x24xi32>
      %203 = arith.select %202, %81, %200 : vector<24x24xi1>, vector<24x24xf32>
      %c4_i32_64 = arith.constant 4 : i32
      %204 = vector.broadcast %c4_i32_64 : i32 to vector<24x24xi32>
      %205 = arith.cmpi eq, %136, %204 : vector<24x24xi32>
      %206 = arith.select %205, %81, %203 : vector<24x24xi1>, vector<24x24xf32>
      %207 = vector.broadcast %1 : f32 to vector<24x24xf32>
      %208 = arith.mulf %207, %176 : vector<24x24xf32>
      %cst_65 = arith.constant 1.000000e+00 : f32
      %209 = arith.subf %cst_65, %1 : f32
      %210 = vector.broadcast %209 : f32 to vector<1x1xf32>
      %211 = arith.mulf %210, %41 : vector<1x1xf32>
      %212 = vector.broadcast %211 : vector<1x1xf32> to vector<24x24xf32>
      %213 = arith.addf %208, %212 : vector<24x24xf32>
      %cst_66 = arith.constant 0.000000e+00 : f32
      %cst_67 = arith.constant 1.000000e+00 : f32
      %214 = vector.broadcast %cst_66 : f32 to vector<24x24xf32>
      %215 = arith.maximumf %214, %213 : vector<24x24xf32>
      %216 = vector.broadcast %cst_67 : f32 to vector<24x24xf32>
      %217 = arith.minimumf %216, %215 : vector<24x24xf32>
      %218 = vector.broadcast %1 : f32 to vector<24x24xf32>
      %219 = arith.mulf %218, %191 : vector<24x24xf32>
      %cst_68 = arith.constant 1.000000e+00 : f32
      %220 = arith.subf %cst_68, %1 : f32
      %221 = vector.broadcast %220 : f32 to vector<1x1xf32>
      %222 = arith.mulf %221, %41 : vector<1x1xf32>
      %223 = vector.broadcast %222 : vector<1x1xf32> to vector<24x24xf32>
      %224 = arith.addf %219, %223 : vector<24x24xf32>
      %cst_69 = arith.constant 0.000000e+00 : f32
      %cst_70 = arith.constant 1.000000e+00 : f32
      %225 = vector.broadcast %cst_69 : f32 to vector<24x24xf32>
      %226 = arith.maximumf %225, %224 : vector<24x24xf32>
      %227 = vector.broadcast %cst_70 : f32 to vector<24x24xf32>
      %228 = arith.minimumf %227, %226 : vector<24x24xf32>
      %229 = vector.broadcast %1 : f32 to vector<24x24xf32>
      %230 = arith.mulf %229, %206 : vector<24x24xf32>
      %cst_71 = arith.constant 1.000000e+00 : f32
      %231 = arith.subf %cst_71, %1 : f32
      %232 = vector.broadcast %231 : f32 to vector<1x1xf32>
      %233 = arith.mulf %232, %41 : vector<1x1xf32>
      %234 = vector.broadcast %233 : vector<1x1xf32> to vector<24x24xf32>
      %235 = arith.addf %230, %234 : vector<24x24xf32>
      %cst_72 = arith.constant 0.000000e+00 : f32
      %cst_73 = arith.constant 1.000000e+00 : f32
      %236 = vector.broadcast %cst_72 : f32 to vector<24x24xf32>
      %237 = arith.maximumf %236, %235 : vector<24x24xf32>
      %238 = vector.broadcast %cst_73 : f32 to vector<24x24xf32>
      %239 = arith.minimumf %238, %237 : vector<24x24xf32>
      %c0_74 = arith.constant 0 : index
      %c0_75 = arith.constant 0 : index
      %c0_76 = arith.constant 0 : index
      %240 = vector.load %arg4[%c0_74, %c0_75, %c0_76] : memref<3x24x24xf32, #tpu.memory_space<vmem>>, vector<1x24x24xf32>
      %241 = vector.shape_cast %240 : vector<1x24x24xf32> to vector<24x24xf32>
      %242 = vector.shape_cast %217 : vector<24x24xf32> to vector<1x24x24xf32>
      tpu.vector_store %arg4[%c0_74, %c0_75, %c0_76], %242 {strides = array<i32>} : memref<3x24x24xf32, #tpu.memory_space<vmem>>, vector<1x24x24xf32>,
      %c1_77 = arith.constant 1 : index
      %c0_78 = arith.constant 0 : index
      %c0_79 = arith.constant 0 : index
      %243 = vector.load %arg4[%c1_77, %c0_78, %c0_79] : memref<3x24x24xf32, #tpu.memory_space<vmem>>, vector<1x24x24xf32>
      %244 = vector.shape_cast %243 : vector<1x24x24xf32> to vector<24x24xf32>
      %245 = vector.shape_cast %228 : vector<24x24xf32> to vector<1x24x24xf32>
      tpu.vector_store %arg4[%c1_77, %c0_78, %c0_79], %245 {strides = array<i32>} : memref<3x24x24xf32, #tpu.memory_space<vmem>>, vector<1x24x24xf32>,
      %c2_80 = arith.constant 2 : index
      %c0_81 = arith.constant 0 : index
      %c0_82 = arith.constant 0 : index
      %246 = vector.load %arg4[%c2_80, %c0_81, %c0_82] : memref<3x24x24xf32, #tpu.memory_space<vmem>>, vector<1x24x24xf32>
      %247 = vector.shape_cast %246 : vector<1x24x24xf32> to vector<24x24xf32>
      %248 = vector.shape_cast %239 : vector<24x24xf32> to vector<1x24x24xf32>
      tpu.vector_store %arg4[%c2_80, %c0_81, %c0_82], %248 {strides = array<i32>} : memref<3x24x24xf32, #tpu.memory_space<vmem>>, vector<1x24x24xf32>,
    } else {
    }
    return
  }
  func.func @transform_0(%arg0: i32, %arg1: i32) -> i32 {
    %c0_i32 = arith.constant 0 : i32
    %c0_i32_0 = arith.constant 0 : i32
    return %c0_i32 : i32
  }
  func.func @transform_1(%arg0: i32, %arg1: i32) -> (i32, i32, i32) {
    %c0_i32 = arith.constant 0 : i32
    %c0_i32_0 = arith.constant 0 : i32
    %c0_i32_1 = arith.constant 0 : i32
    return %c0_i32, %arg1, %c0_i32_0 : i32, i32, i32
  }
  func.func @transform_2(%arg0: i32, %arg1: i32) -> (i32, i32, i32) {
    %c0_i32 = arith.constant 0 : i32
    %c0_i32_0 = arith.constant 0 : i32
    %c0_i32_1 = arith.constant 0 : i32
    return %c0_i32, %arg1, %c0_i32_0 : i32, i32, i32
  }
}

</mosaic_0001>

<llo_original>
// kernel: tpu_custom_call.1
$region0: #{tpu_custom_call.1}
  #allocation0 [shape = 'u32[]', space=smem, size = 0x4, offset = 0x4, fixed_abs, tag = 'smem constant byte address 0x4 - core index']
  #allocation1 [shape = 'u32[144,128]{1,0:T(1,128)}', space=vmem, size = 0x12000, scoped, tag = 'internal scratch']
  #allocation2 [shape = 'f32[1,1]{1,0:T(1,128)}', space=vmem, size = 0x200, scoped, tag = 'scratch operand']
  %s0 = inlined_call_operand.hbm [shape: f32[4], index: 0, kind: input, shape index: {}]
  %s1 = inlined_call_operand.hbm [shape: f32[3,24,24], index: 1, kind: input, shape index: {}]
  %s2 = inlined_call_operand.hbm [shape: f32[3,24,24], index: 2, kind: output, shape index: {}]
  %s3 = sld [smem:[#allocation0]]
  $region61: #{tpu_custom_call.1} parent=0
    _
  %s5 = ssub.s32 1, %s3
  %s6 = scalar_select 0, %s5, %s3
  $region1: #{tpu_custom_call.1} parent=0
    #allocation3 [shape = 'u8[512]{0}', space=smem, size = 0x200, scoped, tag = 'input window, operand 0, single buffered']
    #allocation4 [shape = 's32[2]{0}', space=sflag, size = 0x8, scoped, tag = 'scoped memory for tpu_custom_call.1']
    #allocation5 [shape = 's32[2]{0}', space=sflag, size = 0x8, scoped, tag = 'scoped memory for tpu_custom_call.1']
    #allocation6 [shape = 's32[2]{0}', space=sflag, size = 0x8, scoped, tag = 'scoped memory for tpu_custom_call.1']
    #allocation7 [shape = 'u8[36864]{0}', space=vmem, size = 0x9000, scoped, tag = 'input window, operand 1, single buffered']
    #allocation8 [shape = 'u8[36864]{0}', space=vmem, size = 0x9000, scoped, tag = 'output window, operand 0, single buffered']
    %7 = vsyncpa [#allocation6], 0
    %8 = vsyncpa [#allocation4], 0
    %9 = vsyncpa [#allocation5], 0
    loop: start=0, step=1, limit=4
    $region2: #{tpu_custom_call.1} parent=1 // loop_pre_header
      _
    $region3: #{tpu_custom_call.1} parent=1 // loop_header
      %s11 = sphi 0, %s15
      %p12 = scmp.ge.s32.totalorder %s11, 4
      %s18 = sphi 0, %s30
      %s19 = sphi 0, %s26
      %s20 = sphi 0, %s18
      %s21 = sphi 0, %s19
      %s22 = sphi 0, %s20
      %s23 = sphi 0, %s21
      %s31 = sphi 0, %s31
      %s33 = sphi 0, %s31
      %s34 = sphi 0, %s33
      %s48 = sphi 0, %s34
      %s54 = sphi 0, %s56
      %s57 = sphi 0, %s54
      %s58 = sphi 0, %s57
      %s74 = sphi 0, %s58
      %s80 = sphi 0, %s82
      %s83 = sphi 0, %s80
      %s84 = sphi 0, %s83
      %s100 = sphi 0, %s84
    $region4: #{tpu_custom_call.1} parent=1 // loop_header_branch
      %14 = sbr.rel (%p12) target = $region8
    $region5: #{tpu_custom_call.1} parent=1 // loop_body
      %s16 = ssub.s32 %s11, 1
      %s17 = ssub.s32 %s11, 2
      %s24 = sadd.s32 1, %s19
      %p25 = scmp.ge.s32.totalorder %s24, 1
      %s26 = scalar_select %p25, 0, %s24
      %s27 = sadd.s32 1, %s18
      %s28 = scalar_select %p25, %s27, %s18
      %p29 = scmp.ge.s32.totalorder %s28, 2
      %s30 = scalar_select %p29, 0, %s28
      %s32 = sadd.s32 %s31, 1
      %p35 = scmp.eq.s32.totalorder %s11, 1
      %p36 = scmp.ne.s32.totalorder %s31, %s33
      %p37 = scmp.eq.s32.totalorder %s11, 0
      %p38 = por %p36, %p37
      %p39 = scmp.ne.s32.totalorder %s31, %s33
      %p40 = scmp.eq.s32.totalorder %s16, 1
      %p41 = por %p39, %p40
      %p42 = scmp.ne.s32.totalorder %s33, %s34
      %p43 = scmp.eq.s32.totalorder %s16, 0
      %p44 = por %p42, %p43
      %p45 = scmp.ne.s32.totalorder %s33, %s34
      %p46 = scmp.eq.s32.totalorder %s17, 1
      %p47 = por %p45, %p46
      %p49 = scmp.ne.s32.totalorder %s34, %s48
      %p50 = scmp.eq.s32.totalorder %s17, 0
      %p51 = por %p49, %p50
      %s52 = ssub.s32 %s19, %s26
      %p53 = scmp.eq.s32.totalorder %s52, 0
      %s55 = sadd.s32 %s54, 1
      %s56 = scalar_select %p53, %s54, %s55
      %p59 = pneg %p53
      %p60 = scmp.eq.s32.totalorder %s11, 1
      %p61 = por %p59, %p60
      %p62 = scmp.ne.s32.totalorder %s54, %s57
      %p63 = scmp.eq.s32.totalorder %s11, 0
      %p64 = por %p62, %p63
      %p65 = scmp.ne.s32.totalorder %s54, %s57
      %p66 = scmp.eq.s32.totalorder %s16, 1
      %p67 = por %p65, %p66
      %p68 = scmp.ne.s32.totalorder %s57, %s58
      %p69 = scmp.eq.s32.totalorder %s16, 0
      %p70 = por %p68, %p69
      %p71 = scmp.ne.s32.totalorder %s57, %s58
      %p72 = scmp.eq.s32.totalorder %s17, 1
      %p73 = por %p71, %p72
      %p75 = scmp.ne.s32.totalorder %s58, %s74
      %p76 = scmp.eq.s32.totalorder %s17, 0
      %p77 = por %p75, %p76
      %s78 = ssub.s32 %s19, %s26
      %p79 = scmp.eq.s32.totalorder %s78, 0
      %s81 = sadd.s32 %s80, 1
      %s82 = scalar_select %p79, %s80, %s81
      %p85 = pneg %p79
      %p86 = scmp.eq.s32.totalorder %s11, 1
      %p87 = por %p85, %p86
      %p88 = scmp.ne.s32.totalorder %s80, %s83
      %p89 = scmp.eq.s32.totalorder %s11, 0
      %p90 = por %p88, %p89
      %p91 = scmp.ne.s32.totalorder %s80, %s83
      %p92 = scmp.eq.s32.totalorder %s16, 1
      %p93 = por %p91, %p92
      %p94 = scmp.ne.s32.totalorder %s83, %s84
      %p95 = scmp.eq.s32.totalorder %s16, 0
      %p96 = por %p94, %p95
      %p97 = scmp.ne.s32.totalorder %s83, %s84
      %p98 = scmp.eq.s32.totalorder %s17, 1
      %p99 = por %p97, %p98
      %p101 = scmp.ne.s32.totalorder %s84, %s100
      %p102 = scmp.eq.s32.totalorder %s17, 0
      %p103 = por %p101, %p102
      %p104 = scmp.le.s32.totalorder 1, %s11
      %p105 = scmp.lt.s32.totalorder %s11, 3
      %p106 = pnand %p104, %p105
      %p107 = pneg %p106
      // Predicated region
      $region9: #{tpu_custom_call.1} parent=5 // pred_check
        _
      $region10: #{tpu_custom_call.1} parent=5 // pred_check_branch
        %109 = sbr.rel (%p106) target = $region12
      $region11: #{tpu_custom_call.1} parent=5 // pred_region
        %s110 = ssub.s32 %s11, 1
        // Predicated region
        $region13: #{tpu_custom_call.1} parent=11 // pred_check
          %p111 = pneg %p44
        $region14: #{tpu_custom_call.1} parent=11 // pred_check_branch
          %113 = sbr.rel (%p111) target = $region16
        $region15: #{tpu_custom_call.1} parent=11 // pred_region
          %s115 = ssub.s32 16, 16
          %116 = vsyncadd [#allocation6], %s115
          %119 = dma.hbm_to_smem %s0, 16, [#allocation3], [#allocation6]
        $region16: #{tpu_custom_call.1} parent=11 // pred_fallthru
          _
        // Predicated region
        $region17: #{tpu_custom_call.1} parent=11 // pred_check
          %p120 = pneg %p70
        $region18: #{tpu_custom_call.1} parent=11 // pred_check_branch
          %122 = sbr.rel (%p120) target = $region20
        $region19: #{tpu_custom_call.1} parent=11 // pred_region
          %s123 = smul.u32 3, %s21
          %s125 = ssub.s32 1152, 1152
          %126 = vsyncadd [#allocation4], %s125
          %s127 = smul.addr %s123, 128
          %s128 = scalar_lea.hbm %s1, %s127
          %s129 = sshll.u32 [#allocation7], 4
          %s130 = int_to_ptr.vmem [resolvable:$true] %s129
          %135 = dma.hbm_to_vmem [thread:$0]  %s128, 1152, %s130, [#allocation4], 128, 128, 8
        $region20: #{tpu_custom_call.1} parent=11 // pred_fallthru
          _
      $region12: #{tpu_custom_call.1} parent=5 // pred_fallthru
        _
      %p136 = scmp.lt.s32.totalorder %s11, 2
      // Predicated region
      $region21: #{tpu_custom_call.1} parent=5 // pred_check
        %p137 = pneg %p136
      $region22: #{tpu_custom_call.1} parent=5 // pred_check_branch
        %139 = sbr.rel (%p137) target = $region24
      $region23: #{tpu_custom_call.1} parent=5 // pred_region
        _
      $region24: #{tpu_custom_call.1} parent=5 // pred_fallthru
        _
      %p140 = scmp.le.s32.totalorder 1, %s11
      %p141 = scmp.lt.s32.totalorder %s11, 3
      %p142 = pnand %p140, %p141
      %p143 = pneg %p142
      // Predicated region
      $region25: #{tpu_custom_call.1} parent=5 // pred_check
        _
      $region26: #{tpu_custom_call.1} parent=5 // pred_check_branch
        %145 = sbr.rel (%p142) target = $region28
      $region27: #{tpu_custom_call.1} parent=5 // pred_region
        %s146 = ssub.s32 %s11, 1
        // Predicated region
        $region29: #{tpu_custom_call.1} parent=27 // pred_check
          %p147 = pneg %p44
        $region30: #{tpu_custom_call.1} parent=27 // pred_check_branch
          %149 = sbr.rel (%p147) target = $region32
        $region31: #{tpu_custom_call.1} parent=27 // pred_region
          %150 = dma.done [#allocation6], 16
        $region32: #{tpu_custom_call.1} parent=27 // pred_fallthru
          _
        // Predicated region
        $region33: #{tpu_custom_call.1} parent=27 // pred_check
          %p151 = pneg %p70
        $region34: #{tpu_custom_call.1} parent=27 // pred_check_branch
          %153 = sbr.rel (%p151) target = $region36
        $region35: #{tpu_custom_call.1} parent=27 // pred_region
          %154 = dma.done [#allocation4], 1152
        $region36: #{tpu_custom_call.1} parent=27 // pred_fallthru
          _
        %155 = sfence
        %p156 = pneg %p44
        %p157 = pneg %p41
        %p158 = pneg %p70
        %p159 = pneg %p67
        %p160 = pneg %p96
        %p161 = pneg %p93
        %s162 = smul.u32 3, %s21
        %s163 = smul.u32 3, %s21
        %s164 = sld [smem:[#allocation3]]
        %s165 = sld [smem:[#allocation3 + $0x1]]
        %s166 = sld [smem:[#allocation3 + $0x2]]
        %s167 = sld [smem:[#allocation3 + $0x3]]
        %v168 = vld [vmem:[#allocation7] sm:$0xff]
        %v169 = vld [vmem:[#allocation7 + $0x8] sm:$0xff]
        %v170 = vld [vmem:[#allocation7 + $0x10] sm:$0xff]
        %v171 = vstv %s164
        %v172 = vmul.f32 %v168, %v171
        %v173 = vmul.f32 %v169, %v171
        %v174 = vmul.f32 %v170, %v171
        %v175 = vmax.f32 %v172, 0.0
        %v176 = vmax.f32 %v173, 0.0
        %v177 = vmax.f32 %v174, 0.0
        %v178 = vmin.f32 %v175, 1.0
        %v179 = vmin.f32 %v176, 1.0
        %v180 = vmin.f32 %v177, 1.0
        %s181 = scalar_lea.vmem [#allocation7], 24
        %v182 = vld [vmem:[%s181] sm:$0xff]
        %v183 = vld [vmem:[%s181 + $0x8] sm:$0xff]
        %v184 = vld [vmem:[%s181 + $0x10] sm:$0xff]
        %v185 = vmul.f32 %v182, %v171
        %v186 = vmul.f32 %v183, %v171
        %v187 = vmul.f32 %v184, %v171
        %v188 = vmax.f32 %v185, 0.0
        %v189 = vmax.f32 %v186, 0.0
        %v190 = vmax.f32 %v187, 0.0
        %v191 = vmin.f32 %v188, 1.0
        %v192 = vmin.f32 %v189, 1.0
        %v193 = vmin.f32 %v190, 1.0
        %s194 = scalar_lea.vmem [#allocation7], 48
        %v195 = vld [vmem:[%s194] sm:$0xff]
        %v196 = vld [vmem:[%s194 + $0x8] sm:$0xff]
        %v197 = vld [vmem:[%s194 + $0x10] sm:$0xff]
        %v198 = vmul.f32 %v195, %v171
        %v199 = vmul.f32 %v196, %v171
        %v200 = vmul.f32 %v197, %v171
        %v201 = vmax.f32 %v198, 0.0
        %v202 = vmax.f32 %v199, 0.0
        %v203 = vmax.f32 %v200, 0.0
        %v204 = vmin.f32 %v201, 1.0
        %v205 = vmin.f32 %v202, 1.0
        %v206 = vmin.f32 %v203, 1.0
        %p207 = scmp.eq.s32.totalorder %s20, 0
        %p208 = scmp.eq.s32.totalorder %s21, 0
        %p209 = pnand %p207, %p208
        %p210 = pneg %p209
        // Predicated region
        $region37: #{tpu_custom_call.1} parent=27 // pred_check
          _
        $region38: #{tpu_custom_call.1} parent=27 // pred_check_branch
          %212 = sbr.rel (%p209) target = $region40
        $region39: #{tpu_custom_call.1} parent=27 // pred_region
          %vm213 = vcmask 0
          %214 = vst.msk [vmem:[#allocation2] sm:$0x1] %vm213, 0.0
        $region40: #{tpu_custom_call.1} parent=27 // pred_fallthru
          _
        // Predicated region
        $region41: #{tpu_custom_call.1} parent=27 // pred_check
          %p215 = pneg %p207
        $region42: #{tpu_custom_call.1} parent=27 // pred_check_branch
          %217 = sbr.rel (%p215) target = $region44
        $region43: #{tpu_custom_call.1} parent=27 // pred_region
          %v218 = vmul.f32 %v178, 0.2989
          %v219 = vmul.f32 %v179, 0.2989
          %v220 = vmul.f32 %v180, 0.2989
          %v221 = vmul.f32 %v191, 0.587
          %v222 = vmul.f32 %v192, 0.587
          %v223 = vmul.f32 %v193, 0.587
          %v224 = vadd.f32 %v218, %v221
          %v225 = vadd.f32 %v219, %v222
          %v226 = vadd.f32 %v220, %v223
          %v227 = vmul.f32 %v204, 0.114
          %v228 = vmul.f32 %v205, 0.114
          %v229 = vmul.f32 %v206, 0.114
          %v230 = vadd.f32 %v224, %v227
          %v231 = vadd.f32 %v225, %v228
          %v232 = vadd.f32 %v226, %v229
          %v233 = vstv %s166
          %v234 = vmul.f32 %v233, %v178
          %v235 = vmul.f32 %v233, %v179
          %v236 = vmul.f32 %v233, %v180
          %s237 = ssub.f32 1.0, %s166
          %v238 = vstv %s237
          %v239 = vmul.f32 %v238, %v230
          %v240 = vmul.f32 %v238, %v231
          %v241 = vmul.f32 %v238, %v232
          %v242 = vadd.f32 %v234, %v239
          %v243 = vadd.f32 %v235, %v240
          %v244 = vadd.f32 %v236, %v241
          %v245 = vmax.f32 %v242, 0.0
          %v246 = vmax.f32 %v243, 0.0
          %v247 = vmax.f32 %v244, 0.0
          %v248 = vmin.f32 %v245, 1.0
          %v249 = vmin.f32 %v246, 1.0
          %v250 = vmin.f32 %v247, 1.0
          %v251 = vmul.f32 %v233, %v191
          %v252 = vmul.f32 %v233, %v192
          %v253 = vmul.f32 %v233, %v193
          %v254 = vadd.f32 %v251, %v239
          %v255 = vadd.f32 %v252, %v240
          %v256 = vadd.f32 %v253, %v241
          %v257 = vmax.f32 %v254, 0.0
          %v258 = vmax.f32 %v255, 0.0
          %v259 = vmax.f32 %v256, 0.0
          %v260 = vmin.f32 %v257, 1.0
          %v261 = vmin.f32 %v258, 1.0
          %v262 = vmin.f32 %v259, 1.0
          %v263 = vmul.f32 %v233, %v204
          %v264 = vmul.f32 %v233, %v205
          %v265 = vmul.f32 %v233, %v206
          %v266 = vadd.f32 %v263, %v239
          %v267 = vadd.f32 %v264, %v240
          %v268 = vadd.f32 %v265, %v241
          %v269 = vmax.f32 %v266, 0.0
          %v270 = vmax.f32 %v267, 0.0
          %v271 = vmax.f32 %v268, 0.0
          %v272 = vmin.f32 %v269, 1.0
          %v273 = vmin.f32 %v270, 1.0
          %v274 = vmin.f32 %v271, 1.0
          %v275 = vmax.f32 %v248, %v260
          %v276 = vmax.f32 %v249, %v261
          %v277 = vmax.f32 %v250, %v262
          %v278 = vmax.f32 %v275, %v272
          %v279 = vmax.f32 %v276, %v273
          %v280 = vmax.f32 %v277, %v274
          %v281 = vmin.f32 %v248, %v260
          %v282 = vmin.f32 %v249, %v261
          %v283 = vmin.f32 %v250, %v262
          %v284 = vmin.f32 %v281, %v272
          %v285 = vmin.f32 %v282, %v273
          %v286 = vmin.f32 %v283, %v274
          %vm287 = vcmp.eq.f32.partialorder %v278, %v284
          %vm288 = vcmp.eq.f32.partialorder %v279, %v285
          %vm289 = vcmp.eq.f32.partialorder %v280, %v286
          %v290 = vsub.f32 %v278, %v284
          %v291 = vsub.f32 %v279, %v285
          %v292 = vsub.f32 %v280, %v286
          %v293 = vsel %vm287, 1.0, %v278
          %v294 = vsel %vm288, 1.0, %v279
          %v295 = vsel %vm289, 1.0, %v280
          %v296 = vrcp.pop %v293
          %v297 = vrcp.pop %v294
          %v298 = vrcp.pop %v295
          %v299 = vmul.f32 %v290, %v296
          %v300 = vmul.f32 %v291, %v297
          %v301 = vmul.f32 %v292, %v298
          %v302 = vsel %vm287, 1.0, %v290
          %v303 = vsel %vm288, 1.0, %v291
          %v304 = vsel %vm289, 1.0, %v292
          %v305 = vrcp.pop %v302
          %v306 = vrcp.pop %v303
          %v307 = vrcp.pop %v304
          %v308 = vsub.f32 %v278, %v248
          %v309 = vsub.f32 %v279, %v249
          %v310 = vsub.f32 %v280, %v250
          %v311 = vmul.f32 %v308, %v305
          %v312 = vmul.f32 %v309, %v306
          %v313 = vmul.f32 %v310, %v307
          %v314 = vsub.f32 %v278, %v260
          %v315 = vsub.f32 %v279, %v261
          %v316 = vsub.f32 %v280, %v262
          %v317 = vmul.f32 %v314, %v305
          %v318 = vmul.f32 %v315, %v306
          %v319 = vmul.f32 %v316, %v307
          %v320 = vsub.f32 %v278, %v272
          %v321 = vsub.f32 %v279, %v273
          %v322 = vsub.f32 %v280, %v274
          %v323 = vmul.f32 %v320, %v305
          %v324 = vmul.f32 %v321, %v306
          %v325 = vmul.f32 %v322, %v307
          %vm326 = vcmp.eq.f32.partialorder %v278, %v248
          %vm327 = vcmp.eq.f32.partialorder %v279, %v249
          %vm328 = vcmp.eq.f32.partialorder %v280, %v250
          %v329 = vsub.f32 %v323, %v317
          %v330 = vsub.f32 %v324, %v318
          %v331 = vsub.f32 %v325, %v319
          %v332 = vsel %vm326, %v329, 0.0
          %v333 = vsel %vm327, %v330, 0.0
          %v334 = vsel %vm328, %v331, 0.0
          %vm335 = vcmp.eq.f32.partialorder %v278, %v260
          %vm336 = vcmp.eq.f32.partialorder %v279, %v261
          %vm337 = vcmp.eq.f32.partialorder %v280, %v262
          %vm338 = vcmp.ne.f32.partialorder %v278, %v248
          %vm339 = vcmp.ne.f32.partialorder %v279, %v249
          %vm340 = vcmp.ne.f32.partialorder %v280, %v250
          %vm341 = vmand %vm335, %vm338
          %vm342 = vmand %vm336, %vm339
          %vm343 = vmand %vm337, %vm340
          %v344 = vadd.f32 %v311, 2.0
          %v345 = vadd.f32 %v312, 2.0
          %v346 = vadd.f32 %v313, 2.0
          %v347 = vsub.f32 %v344, %v323
          %v348 = vsub.f32 %v345, %v324
          %v349 = vsub.f32 %v346, %v325
          %v350 = vsel %vm341, %v347, 0.0
          %v351 = vsel %vm342, %v348, 0.0
          %v352 = vsel %vm343, %v349, 0.0
          %vm353 = vcmp.ne.f32.partialorder %v278, %v260
          %vm354 = vcmp.ne.f32.partialorder %v279, %v261
          %vm355 = vcmp.ne.f32.partialorder %v280, %v262
          %vm356 = vmand %vm353, %vm338
          %vm357 = vmand %vm354, %vm339
          %vm358 = vmand %vm355, %vm340
          %v359 = vadd.f32 %v317, 4.0
          %v360 = vadd.f32 %v318, 4.0
          %v361 = vadd.f32 %v319, 4.0
          %v362 = vsub.f32 %v359, %v311
          %v363 = vsub.f32 %v360, %v312
          %v364 = vsub.f32 %v361, %v313
          %v365 = vsel %vm356, %v362, 0.0
          %v366 = vsel %vm357, %v363, 0.0
          %v367 = vsel %vm358, %v364, 0.0
          %v368 = vadd.f32 %v332, %v350
          %v369 = vadd.f32 %v333, %v351
          %v370 = vadd.f32 %v334, %v352
          %v371 = vadd.f32 %v368, %v365
          %v372 = vadd.f32 %v369, %v366
          %v373 = vadd.f32 %v370, %v367
          %v374 = vmul.f32 %v371, 0.16666667
          %v375 = vmul.f32 %v372, 0.16666667
          %v376 = vmul.f32 %v373, 0.16666667
          %v377 = vadd.f32 %v374, 1.0
          %v378 = vadd.f32 %v375, 1.0
          %v379 = vadd.f32 %v376, 1.0
          %v380 = vfloor.f32 %v377
          %v381 = vfloor.f32 %v378
          %v382 = vfloor.f32 %v379
          %v383 = vsub.f32 %v377, %v380
          %v384 = vsub.f32 %v378, %v381
          %v385 = vsub.f32 %v379, %v382
          %v386 = vstv %s167
          %v387 = vadd.f32 %v383, %v386
          %v388 = vadd.f32 %v384, %v386
          %v389 = vadd.f32 %v385, %v386
          %v390 = vfloor.f32 %v387
          %v391 = vfloor.f32 %v388
          %v392 = vfloor.f32 %v389
          %v393 = vsub.f32 %v387, %v390
          %v394 = vsub.f32 %v388, %v391
          %v395 = vsub.f32 %v389, %v392
          %v396 = vmul.f32 %v393, 6.0
          %v397 = vmul.f32 %v394, 6.0
          %v398 = vmul.f32 %v395, 6.0
          %v399 = vfloor.f32 %v396
          %v400 = vfloor.f32 %v397
          %v401 = vfloor.f32 %v398
          %v402 = vsub.f32 %v396, %v399
          %v403 = vsub.f32 %v397, %v400
          %v404 = vsub.f32 %v398, %v401
          %v405 = vcvt.f32.s32.to.zero.pseudo %v399
          %v406 = vcvt.f32.s32.to.zero.pseudo %v400
          %v407 = vcvt.f32.s32.to.zero.pseudo %v401
          %vm408 = vcmp.lt.s32.totalorder %v405, 5
          %v409 = vsel %vm408, %v405, 5
          %vm410 = vcmp.lt.s32.totalorder %v406, 5
          %v411 = vsel %vm410, %v406, 5
          %vm412 = vcmp.lt.s32.totalorder %v407, 5
          %v413 = vsel %vm412, %v407, 5
          %v414 = vsub.f32 1.0, %v299
          %v415 = vsub.f32 1.0, %v300
          %v416 = vsub.f32 1.0, %v301
          %v417 = vmul.f32 %v278, %v414
          %v418 = vmul.f32 %v279, %v415
          %v419 = vmul.f32 %v280, %v416
          %v420 = vmax.f32 %v417, 0.0
          %v421 = vmax.f32 %v418, 0.0
          %v422 = vmax.f32 %v419, 0.0
          %v423 = vmin.f32 %v420, 1.0
          %v424 = vmin.f32 %v421, 1.0
          %v425 = vmin.f32 %v422, 1.0
          %v426 = vmul.f32 %v299, %v402
          %v427 = vmul.f32 %v300, %v403
          %v428 = vmul.f32 %v301, %v404
          %v429 = vsub.f32 1.0, %v426
          %v430 = vsub.f32 1.0, %v427
          %v431 = vsub.f32 1.0, %v428
          %v432 = vmul.f32 %v278, %v429
          %v433 = vmul.f32 %v279, %v430
          %v434 = vmul.f32 %v280, %v431
          %v435 = vmax.f32 %v432, 0.0
          %v436 = vmax.f32 %v433, 0.0
          %v437 = vmax.f32 %v434, 0.0
          %v438 = vmin.f32 %v435, 1.0
          %v439 = vmin.f32 %v436, 1.0
          %v440 = vmin.f32 %v437, 1.0
          %v441 = vsub.f32 1.0, %v402
          %v442 = vsub.f32 1.0, %v403
          %v443 = vsub.f32 1.0, %v404
          %v444 = vmul.f32 %v299, %v441
          %v445 = vmul.f32 %v300, %v442
          %v446 = vmul.f32 %v301, %v443
          %v447 = vsub.f32 1.0, %v444
          %v448 = vsub.f32 1.0, %v445
          %v449 = vsub.f32 1.0, %v446
          %v450 = vmul.f32 %v278, %v447
          %v451 = vmul.f32 %v279, %v448
          %v452 = vmul.f32 %v280, %v449
          %v453 = vmax.f32 %v450, 0.0
          %v454 = vmax.f32 %v451, 0.0
          %v455 = vmax.f32 %v452, 0.0
          %v456 = vmin.f32 %v453, 1.0
          %v457 = vmin.f32 %v454, 1.0
          %v458 = vmin.f32 %v455, 1.0
          %vm459 = vcmp.eq.s32.totalorder %v409, 1
          %vm460 = vcmp.eq.s32.totalorder %v411, 1
          %vm461 = vcmp.eq.s32.totalorder %v413, 1
          %v462 = vsel %vm459, %v438, %v278
          %v463 = vsel %vm460, %v439, %v279
          %v464 = vsel %vm461, %v440, %v280
          %vm465 = vcmp.eq.s32.totalorder %v409, 2
          %vm466 = vcmp.eq.s32.totalorder %v411, 2
          %vm467 = vcmp.eq.s32.totalorder %v413, 2
          %v468 = vsel %vm465, %v423, %v462
          %v469 = vsel %vm466, %v424, %v463
          %v470 = vsel %vm467, %v425, %v464
          %vm471 = vcmp.eq.s32.totalorder %v409, 3
          %vm472 = vcmp.eq.s32.totalorder %v411, 3
          %vm473 = vcmp.eq.s32.totalorder %v413, 3
          %v474 = vsel %vm471, %v423, %v468
          %v475 = vsel %vm472, %v424, %v469
          %v476 = vsel %vm473, %v425, %v470
          %vm477 = vcmp.eq.s32.totalorder %v409, 4
          %vm478 = vcmp.eq.s32.totalorder %v411, 4
          %vm479 = vcmp.eq.s32.totalorder %v413, 4
          %v480 = vsel %vm477, %v456, %v474
          %v481 = vsel %vm478, %v457, %v475
          %v482 = vsel %vm479, %v458, %v476
          %vm483 = vcmp.eq.s32.totalorder %v409, 0
          %vm484 = vcmp.eq.s32.totalorder %v411, 0
          %vm485 = vcmp.eq.s32.totalorder %v413, 0
          %v486 = vsel %vm483, %v456, %v423
          %v487 = vsel %vm484, %v457, %v424
          %v488 = vsel %vm485, %v458, %v425
          %v489 = vsel %vm459, %v278, %v486
          %v490 = vsel %vm460, %v279, %v487
          %v491 = vsel %vm461, %v280, %v488
          %v492 = vsel %vm465, %v278, %v489
          %v493 = vsel %vm466, %v279, %v490
          %v494 = vsel %vm467, %v280, %v491
          %v495 = vsel %vm471, %v438, %v492
          %v496 = vsel %vm472, %v439, %v493
          %v497 = vsel %vm473, %v440, %v494
          %v498 = vsel %vm477, %v423, %v495
          %v499 = vsel %vm478, %v424, %v496
          %v500 = vsel %vm479, %v425, %v497
          %v501 = vsel %vm483, %v423, %v438
          %v502 = vsel %vm484, %v424, %v439
          %v503 = vsel %vm485, %v425, %v440
          %v504 = vsel %vm459, %v423, %v501
          %v505 = vsel %vm460, %v424, %v502
          %v506 = vsel %vm461, %v425, %v503
          %v507 = vsel %vm465, %v456, %v504
          %v508 = vsel %vm466, %v457, %v505
          %v509 = vsel %vm467, %v458, %v506
          %v510 = vsel %vm471, %v278, %v507
          %v511 = vsel %vm472, %v279, %v508
          %v512 = vsel %vm473, %v280, %v509
          %v513 = vsel %vm477, %v278, %v510
          %v514 = vsel %vm478, %v279, %v511
          %v515 = vsel %vm479, %v280, %v512
          %v516 = vmul.f32 %v480, 0.2989
          %v517 = vmul.f32 %v481, 0.2989
          %v518 = vmul.f32 %v482, 0.2989
          %v519 = vmul.f32 %v498, 0.587
          %v520 = vmul.f32 %v499, 0.587
          %v521 = vmul.f32 %v500, 0.587
          %v522 = vadd.f32 %v516, %v519
          %v523 = vadd.f32 %v517, %v520
          %v524 = vadd.f32 %v518, %v521
          %v525 = vmul.f32 %v513, 0.114
          %v526 = vmul.f32 %v514, 0.114
          %v527 = vmul.f32 %v515, 0.114
          %v528 = vadd.f32 %v522, %v525
          %v529 = vadd.f32 %v523, %v526
          %v530 = vadd.f32 %v524, %v527
          %v531 = vld [vmem:[#allocation2] sm:$0x1]
          %vm532 = vcmask 195584
          %v533 = vsel %vm532, %v528, 0.0
          %v534 = vsel %vm532, %v529, 0.0
          %v535 = vadd.f32 %v533, %v534
          %v536 = vsel %vm532, %v530, 0.0
          %v537 = vadd.f32 %v535, %v536
          %538 = vadd.xlane.f32.xlu0 %v537
          %v539 = vpop.xlane.xlu0 %538
          %v540 = vrot.slane %v539, 4
          %v541 = vadd.f32 %v539, %v540
          %v542 = vrot.slane %v541, 2
          %v543 = vadd.f32 %v541, %v542
          %v544 = vrot.slane %v543, 1
          %v545 = vadd.f32 %v543, %v544
          %s546 = vtos %v545
          %v547 = vstv %s546
          %v548 = vadd.f32 %v531, %v547
          %vm549 = vcmask 0
          %550 = vst.msk [vmem:[#allocation2] sm:$0x1] %vm549, %v548
        $region44: #{tpu_custom_call.1} parent=27 // pred_fallthru
          _
        %p551 = scmp.eq.s32.totalorder %s20, 1
        // Predicated region
        $region45: #{tpu_custom_call.1} parent=27 // pred_check
          %p552 = pneg %p551
        $region46: #{tpu_custom_call.1} parent=27 // pred_check_branch
          %554 = sbr.rel (%p552) target = $region48
        $region47: #{tpu_custom_call.1} parent=27 // pred_region
          %v555 = vld [vmem:[#allocation2] sm:$0x1]
          %v556 = vmul.f32 %v555, 0.0017361111
          %v557 = vmul.f32 %v178, 0.2989
          %v558 = vmul.f32 %v179, 0.2989
          %v559 = vmul.f32 %v180, 0.2989
          %v560 = vmul.f32 %v191, 0.587
          %v561 = vmul.f32 %v192, 0.587
          %v562 = vmul.f32 %v193, 0.587
          %v563 = vadd.f32 %v557, %v560
          %v564 = vadd.f32 %v558, %v561
          %v565 = vadd.f32 %v559, %v562
          %v566 = vmul.f32 %v204, 0.114
          %v567 = vmul.f32 %v205, 0.114
          %v568 = vmul.f32 %v206, 0.114
          %v569 = vadd.f32 %v563, %v566
          %v570 = vadd.f32 %v564, %v567
          %v571 = vadd.f32 %v565, %v568
          %v572 = vstv %s166
          %v573 = vmul.f32 %v572, %v178
          %v574 = vmul.f32 %v572, %v179
          %v575 = vmul.f32 %v572, %v180
          %s576 = ssub.f32 1.0, %s166
          %v577 = vstv %s576
          %v578 = vmul.f32 %v577, %v569
          %v579 = vmul.f32 %v577, %v570
          %v580 = vmul.f32 %v577, %v571
          %v581 = vadd.f32 %v573, %v578
          %v582 = vadd.f32 %v574, %v579
          %v583 = vadd.f32 %v575, %v580
          %v584 = vmax.f32 %v581, 0.0
          %v585 = vmax.f32 %v582, 0.0
          %v586 = vmax.f32 %v583, 0.0
          %v587 = vmin.f32 %v584, 1.0
          %v588 = vmin.f32 %v585, 1.0
          %v589 = vmin.f32 %v586, 1.0
          %v590 = vmul.f32 %v572, %v191
          %v591 = vmul.f32 %v572, %v192
          %v592 = vmul.f32 %v572, %v193
          %v593 = vadd.f32 %v590, %v578
          %v594 = vadd.f32 %v591, %v579
          %v595 = vadd.f32 %v592, %v580
          %v596 = vmax.f32 %v593, 0.0
          %v597 = vmax.f32 %v594, 0.0
          %v598 = vmax.f32 %v595, 0.0
          %v599 = vmin.f32 %v596, 1.0
          %v600 = vmin.f32 %v597, 1.0
          %v601 = vmin.f32 %v598, 1.0
          %v602 = vmul.f32 %v572, %v204
          %v603 = vmul.f32 %v572, %v205
          %v604 = vmul.f32 %v572, %v206
          %v605 = vadd.f32 %v602, %v578
          %v606 = vadd.f32 %v603, %v579
          %v607 = vadd.f32 %v604, %v580
          %v608 = vmax.f32 %v605, 0.0
          %v609 = vmax.f32 %v606, 0.0
          %v610 = vmax.f32 %v607, 0.0
          %v611 = vmin.f32 %v608, 1.0
          %v612 = vmin.f32 %v609, 1.0
          %v613 = vmin.f32 %v610, 1.0
          %v614 = vmax.f32 %v587, %v599
          %v615 = vmax.f32 %v588, %v600
          %v616 = vmax.f32 %v589, %v601
          %v617 = vmax.f32 %v614, %v611
          %v618 = vmax.f32 %v615, %v612
          %v619 = vmax.f32 %v616, %v613
          %v620 = vmin.f32 %v587, %v599
          %v621 = vmin.f32 %v588, %v600
          %v622 = vmin.f32 %v589, %v601
          %v623 = vmin.f32 %v620, %v611
          %v624 = vmin.f32 %v621, %v612
          %v625 = vmin.f32 %v622, %v613
          %vm626 = vcmp.eq.f32.partialorder %v617, %v623
          %vm627 = vcmp.eq.f32.partialorder %v618, %v624
          %vm628 = vcmp.eq.f32.partialorder %v619, %v625
          %v629 = vsub.f32 %v617, %v623
          %v630 = vsub.f32 %v618, %v624
          %v631 = vsub.f32 %v619, %v625
          %v632 = vsel %vm626, 1.0, %v617
          %v633 = vsel %vm627, 1.0, %v618
          %v634 = vsel %vm628, 1.0, %v619
          %v635 = vrcp.pop %v632
          %v636 = vrcp.pop %v633
          %v637 = vrcp.pop %v634
          %v638 = vmul.f32 %v629, %v635
          %v639 = vmul.f32 %v630, %v636
          %v640 = vmul.f32 %v631, %v637
          %v641 = vsel %vm626, 1.0, %v629
          %v642 = vsel %vm627, 1.0, %v630
          %v643 = vsel %vm628, 1.0, %v631
          %v644 = vrcp.pop %v641
          %v645 = vrcp.pop %v642
          %v646 = vrcp.pop %v643
          %v647 = vsub.f32 %v617, %v587
          %v648 = vsub.f32 %v618, %v588
          %v649 = vsub.f32 %v619, %v589
          %v650 = vmul.f32 %v647, %v644
          %v651 = vmul.f32 %v648, %v645
          %v652 = vmul.f32 %v649, %v646
          %v653 = vsub.f32 %v617, %v599
          %v654 = vsub.f32 %v618, %v600
          %v655 = vsub.f32 %v619, %v601
          %v656 = vmul.f32 %v653, %v644
          %v657 = vmul.f32 %v654, %v645
          %v658 = vmul.f32 %v655, %v646
          %v659 = vsub.f32 %v617, %v611
          %v660 = vsub.f32 %v618, %v612
          %v661 = vsub.f32 %v619, %v613
          %v662 = vmul.f32 %v659, %v644
          %v663 = vmul.f32 %v660, %v645
          %v664 = vmul.f32 %v661, %v646
          %vm665 = vcmp.eq.f32.partialorder %v617, %v587
          %vm666 = vcmp.eq.f32.partialorder %v618, %v588
          %vm667 = vcmp.eq.f32.partialorder %v619, %v589
          %v668 = vsub.f32 %v662, %v656
          %v669 = vsub.f32 %v663, %v657
          %v670 = vsub.f32 %v664, %v658
          %v671 = vsel %vm665, %v668, 0.0
          %v672 = vsel %vm666, %v669, 0.0
          %v673 = vsel %vm667, %v670, 0.0
          %vm674 = vcmp.eq.f32.partialorder %v617, %v599
          %vm675 = vcmp.eq.f32.partialorder %v618, %v600
          %vm676 = vcmp.eq.f32.partialorder %v619, %v601
          %vm677 = vcmp.ne.f32.partialorder %v617, %v587
          %vm678 = vcmp.ne.f32.partialorder %v618, %v588
          %vm679 = vcmp.ne.f32.partialorder %v619, %v589
          %vm680 = vmand %vm674, %vm677
          %vm681 = vmand %vm675, %vm678
          %vm682 = vmand %vm676, %vm679
          %v683 = vadd.f32 %v650, 2.0
          %v684 = vadd.f32 %v651, 2.0
          %v685 = vadd.f32 %v652, 2.0
          %v686 = vsub.f32 %v683, %v662
          %v687 = vsub.f32 %v684, %v663
          %v688 = vsub.f32 %v685, %v664
          %v689 = vsel %vm680, %v686, 0.0
          %v690 = vsel %vm681, %v687, 0.0
          %v691 = vsel %vm682, %v688, 0.0
          %vm692 = vcmp.ne.f32.partialorder %v617, %v599
          %vm693 = vcmp.ne.f32.partialorder %v618, %v600
          %vm694 = vcmp.ne.f32.partialorder %v619, %v601
          %vm695 = vmand %vm692, %vm677
          %vm696 = vmand %vm693, %vm678
          %vm697 = vmand %vm694, %vm679
          %v698 = vadd.f32 %v656, 4.0
          %v699 = vadd.f32 %v657, 4.0
          %v700 = vadd.f32 %v658, 4.0
          %v701 = vsub.f32 %v698, %v650
          %v702 = vsub.f32 %v699, %v651
          %v703 = vsub.f32 %v700, %v652
          %v704 = vsel %vm695, %v701, 0.0
          %v705 = vsel %vm696, %v702, 0.0
          %v706 = vsel %vm697, %v703, 0.0
          %v707 = vadd.f32 %v671, %v689
          %v708 = vadd.f32 %v672, %v690
          %v709 = vadd.f32 %v673, %v691
          %v710 = vadd.f32 %v707, %v704
          %v711 = vadd.f32 %v708, %v705
          %v712 = vadd.f32 %v709, %v706
          %v713 = vmul.f32 %v710, 0.16666667
          %v714 = vmul.f32 %v711, 0.16666667
          %v715 = vmul.f32 %v712, 0.16666667
          %v716 = vadd.f32 %v713, 1.0
          %v717 = vadd.f32 %v714, 1.0
          %v718 = vadd.f32 %v715, 1.0
          %v719 = vfloor.f32 %v716
          %v720 = vfloor.f32 %v717
          %v721 = vfloor.f32 %v718
          %v722 = vsub.f32 %v716, %v719
          %v723 = vsub.f32 %v717, %v720
          %v724 = vsub.f32 %v718, %v721
          %v725 = vstv %s167
          %v726 = vadd.f32 %v722, %v725
          %v727 = vadd.f32 %v723, %v725
          %v728 = vadd.f32 %v724, %v725
          %v729 = vfloor.f32 %v726
          %v730 = vfloor.f32 %v727
          %v731 = vfloor.f32 %v728
          %v732 = vsub.f32 %v726, %v729
          %v733 = vsub.f32 %v727, %v730
          %v734 = vsub.f32 %v728, %v731
          %v735 = vmul.f32 %v732, 6.0
          %v736 = vmul.f32 %v733, 6.0
          %v737 = vmul.f32 %v734, 6.0
          %v738 = vfloor.f32 %v735
          %v739 = vfloor.f32 %v736
          %v740 = vfloor.f32 %v737
          %v741 = vsub.f32 %v735, %v738
          %v742 = vsub.f32 %v736, %v739
          %v743 = vsub.f32 %v737, %v740
          %v744 = vcvt.f32.s32.to.zero.pseudo %v738
          %v745 = vcvt.f32.s32.to.zero.pseudo %v739
          %v746 = vcvt.f32.s32.to.zero.pseudo %v740
          %vm747 = vcmp.lt.s32.totalorder %v744, 5
          %v748 = vsel %vm747, %v744, 5
          %vm749 = vcmp.lt.s32.totalorder %v745, 5
          %v750 = vsel %vm749, %v745, 5
          %vm751 = vcmp.lt.s32.totalorder %v746, 5
          %v752 = vsel %vm751, %v746, 5
          %v753 = vsub.f32 1.0, %v638
          %v754 = vsub.f32 1.0, %v639
          %v755 = vsub.f32 1.0, %v640
          %v756 = vmul.f32 %v617, %v753
          %v757 = vmul.f32 %v618, %v754
          %v758 = vmul.f32 %v619, %v755
          %v759 = vmax.f32 %v756, 0.0
          %v760 = vmax.f32 %v757, 0.0
          %v761 = vmax.f32 %v758, 0.0
          %v762 = vmin.f32 %v759, 1.0
          %v763 = vmin.f32 %v760, 1.0
          %v764 = vmin.f32 %v761, 1.0
          %v765 = vmul.f32 %v638, %v741
          %v766 = vmul.f32 %v639, %v742
          %v767 = vmul.f32 %v640, %v743
          %v768 = vsub.f32 1.0, %v765
          %v769 = vsub.f32 1.0, %v766
          %v770 = vsub.f32 1.0, %v767
          %v771 = vmul.f32 %v617, %v768
          %v772 = vmul.f32 %v618, %v769
          %v773 = vmul.f32 %v619, %v770
          %v774 = vmax.f32 %v771, 0.0
          %v775 = vmax.f32 %v772, 0.0
          %v776 = vmax.f32 %v773, 0.0
          %v777 = vmin.f32 %v774, 1.0
          %v778 = vmin.f32 %v775, 1.0
          %v779 = vmin.f32 %v776, 1.0
          %v780 = vsub.f32 1.0, %v741
          %v781 = vsub.f32 1.0, %v742
          %v782 = vsub.f32 1.0, %v743
          %v783 = vmul.f32 %v638, %v780
          %v784 = vmul.f32 %v639, %v781
          %v785 = vmul.f32 %v640, %v782
          %v786 = vsub.f32 1.0, %v783
          %v787 = vsub.f32 1.0, %v784
          %v788 = vsub.f32 1.0, %v785
          %v789 = vmul.f32 %v617, %v786
          %v790 = vmul.f32 %v618, %v787
          %v791 = vmul.f32 %v619, %v788
          %v792 = vmax.f32 %v789, 0.0
          %v793 = vmax.f32 %v790, 0.0
          %v794 = vmax.f32 %v791, 0.0
          %v795 = vmin.f32 %v792, 1.0
          %v796 = vmin.f32 %v793, 1.0
          %v797 = vmin.f32 %v794, 1.0
          %vm798 = vcmp.eq.s32.totalorder %v748, 1
          %vm799 = vcmp.eq.s32.totalorder %v750, 1
          %vm800 = vcmp.eq.s32.totalorder %v752, 1
          %v801 = vsel %vm798, %v777, %v617
          %v802 = vsel %vm799, %v778, %v618
          %v803 = vsel %vm800, %v779, %v619
          %vm804 = vcmp.eq.s32.totalorder %v748, 2
          %vm805 = vcmp.eq.s32.totalorder %v750, 2
          %vm806 = vcmp.eq.s32.totalorder %v752, 2
          %v807 = vsel %vm804, %v762, %v801
          %v808 = vsel %vm805, %v763, %v802
          %v809 = vsel %vm806, %v764, %v803
          %vm810 = vcmp.eq.s32.totalorder %v748, 3
          %vm811 = vcmp.eq.s32.totalorder %v750, 3
          %vm812 = vcmp.eq.s32.totalorder %v752, 3
          %v813 = vsel %vm810, %v762, %v807
          %v814 = vsel %vm811, %v763, %v808
          %v815 = vsel %vm812, %v764, %v809
          %vm816 = vcmp.eq.s32.totalorder %v748, 4
          %vm817 = vcmp.eq.s32.totalorder %v750, 4
          %vm818 = vcmp.eq.s32.totalorder %v752, 4
          %v819 = vsel %vm816, %v795, %v813
          %v820 = vsel %vm817, %v796, %v814
          %v821 = vsel %vm818, %v797, %v815
          %vm822 = vcmp.eq.s32.totalorder %v748, 0
          %vm823 = vcmp.eq.s32.totalorder %v750, 0
          %vm824 = vcmp.eq.s32.totalorder %v752, 0
          %v825 = vsel %vm822, %v795, %v762
          %v826 = vsel %vm823, %v796, %v763
          %v827 = vsel %vm824, %v797, %v764
          %v828 = vsel %vm798, %v617, %v825
          %v829 = vsel %vm799, %v618, %v826
          %v830 = vsel %vm800, %v619, %v827
          %v831 = vsel %vm804, %v617, %v828
          %v832 = vsel %vm805, %v618, %v829
          %v833 = vsel %vm806, %v619, %v830
          %v834 = vsel %vm810, %v777, %v831
          %v835 = vsel %vm811, %v778, %v832
          %v836 = vsel %vm812, %v779, %v833
          %v837 = vsel %vm816, %v762, %v834
          %v838 = vsel %vm817, %v763, %v835
          %v839 = vsel %vm818, %v764, %v836
          %v840 = vsel %vm822, %v762, %v777
          %v841 = vsel %vm823, %v763, %v778
          %v842 = vsel %vm824, %v764, %v779
          %v843 = vsel %vm798, %v762, %v840
          %v844 = vsel %vm799, %v763, %v841
          %v845 = vsel %vm800, %v764, %v842
          %v846 = vsel %vm804, %v795, %v843
          %v847 = vsel %vm805, %v796, %v844
          %v848 = vsel %vm806, %v797, %v845
          %v849 = vsel %vm810, %v617, %v846
          %v850 = vsel %vm811, %v618, %v847
          %v851 = vsel %vm812, %v619, %v848
          %v852 = vsel %vm816, %v617, %v849
          %v853 = vsel %vm817, %v618, %v850
          %v854 = vsel %vm818, %v619, %v851
          %v855 = vstv %s165
          %v856 = vmul.f32 %v855, %v819
          %v857 = vmul.f32 %v855, %v820
          %v858 = vmul.f32 %v855, %v821
          %s859 = ssub.f32 1.0, %s165
          %v860 = vstv %s859
          %v861 = vmul.f32 %v860, %v556
          %v863 = vlaneseq
          %v864 = vshrl.u32 %v863, 7
          %v865 = vsub.s32 0, %v864
          %v866 = vrot.slane %v861, %v865
          %867 = vset.pattern.permute.xlu0 0
          %868 = vperm.xlu0 %867, %v866
          %v869 = vpop.permute.xlu0 %868
          %v871 = vadd.f32 %v856, %v869
          %v872 = vadd.f32 %v857, %v869
          %v873 = vadd.f32 %v858, %v869
          %v874 = vmax.f32 %v871, 0.0
          %v875 = vmax.f32 %v872, 0.0
          %v876 = vmax.f32 %v873, 0.0
          %v877 = vmin.f32 %v874, 1.0
          %v878 = vmin.f32 %v875, 1.0
          %v879 = vmin.f32 %v876, 1.0
          %v880 = vmul.f32 %v855, %v837
          %v881 = vmul.f32 %v855, %v838
          %v882 = vmul.f32 %v855, %v839
          %v883 = vadd.f32 %v880, %v869
          %v884 = vadd.f32 %v881, %v869
          %v885 = vadd.f32 %v882, %v869
          %v886 = vmax.f32 %v883, 0.0
          %v887 = vmax.f32 %v884, 0.0
          %v888 = vmax.f32 %v885, 0.0
          %v889 = vmin.f32 %v886, 1.0
          %v890 = vmin.f32 %v887, 1.0
          %v891 = vmin.f32 %v888, 1.0
          %v892 = vmul.f32 %v855, %v852
          %v893 = vmul.f32 %v855, %v853
          %v894 = vmul.f32 %v855, %v854
          %v895 = vadd.f32 %v892, %v869
          %v896 = vadd.f32 %v893, %v869
          %v897 = vadd.f32 %v894, %v869
          %v898 = vmax.f32 %v895, 0.0
          %v899 = vmax.f32 %v896, 0.0
          %v900 = vmax.f32 %v897, 0.0
          %v901 = vmin.f32 %v898, 1.0
          %v902 = vmin.f32 %v899, 1.0
          %v903 = vmin.f32 %v900, 1.0
          %vm904 = vcmask 195584
          %905 = vst.msk [vmem:[#allocation8] sm:$0xff] %vm904, %v877
          %906 = vst.msk [vmem:[#allocation8 + $0x8] sm:$0xff] %vm904, %v878
          %907 = vst.msk [vmem:[#allocation8 + $0x10] sm:$0xff] %vm904, %v879
          %s908 = scalar_lea.vmem [#allocation8], 24
          %909 = vst.msk [vmem:[%s908] sm:$0xff] %vm904, %v889
          %910 = vst.msk [vmem:[%s908 + $0x8] sm:$0xff] %vm904, %v890
          %911 = vst.msk [vmem:[%s908 + $0x10] sm:$0xff] %vm904, %v891
          %s912 = scalar_lea.vmem [#allocation8], 48
          %913 = vst.msk [vmem:[%s912] sm:$0xff] %vm904, %v901
          %914 = vst.msk [vmem:[%s912 + $0x8] sm:$0xff] %vm904, %v902
          %915 = vst.msk [vmem:[%s912 + $0x10] sm:$0xff] %vm904, %v903
        $region48: #{tpu_custom_call.1} parent=27 // pred_fallthru
          _
        // Predicated region
        $region49: #{tpu_custom_call.1} parent=27 // pred_check
          %p916 = pneg %p93
        $region50: #{tpu_custom_call.1} parent=27 // pred_check_branch
          %918 = sbr.rel (%p916) target = $region52
        $region51: #{tpu_custom_call.1} parent=27 // pred_region
          %s919 = smul.u32 3, %s21
          %s921 = ssub.s32 1152, 1152
          %922 = vsyncadd [#allocation5], %s921
          %s923 = smul.addr %s919, 128
          %s924 = scalar_lea.hbm %s2, %s923
          %s925 = sshll.u32 [#allocation8], 4
          %s926 = int_to_ptr.vmem [resolvable:$true] %s925
          %931 = dma.vmem_to_hbm [thread:$0]  %s926, 1152, %s924, [#allocation5], 128, 128, 8
        $region52: #{tpu_custom_call.1} parent=27 // pred_fallthru
          _
        // Predicated region
        $region53: #{tpu_custom_call.1} parent=27 // pred_check
          %p932 = pneg %p93
        $region54: #{tpu_custom_call.1} parent=27 // pred_check_branch
          %934 = sbr.rel (%p932) target = $region56
        $region55: #{tpu_custom_call.1} parent=27 // pred_region
          %935 = dma.done [#allocation5], 1152
        $region56: #{tpu_custom_call.1} parent=27 // pred_fallthru
          _
      $region28: #{tpu_custom_call.1} parent=5 // pred_fallthru
        _
      %p936 = scmp.le.s32.totalorder 2, %s11
      // Predicated region
      $region57: #{tpu_custom_call.1} parent=5 // pred_check
        %p937 = pneg %p936
      $region58: #{tpu_custom_call.1} parent=5 // pred_check_branch
        %939 = sbr.rel (%p937) target = $region60
      $region59: #{tpu_custom_call.1} parent=5 // pred_region
        %s940 = ssub.s32 %s11, 2
      $region60: #{tpu_custom_call.1} parent=5 // pred_fallthru
        _
    $region6: #{tpu_custom_call.1} parent=1 // loop_footer
      %s15 = sadd.s32 1, %s11
    $region7: #{tpu_custom_call.1} parent=1 // loop_footer_branch
      %10 = sbr.rel target = $region3
    $region8: #{tpu_custom_call.1} parent=1 // loop_exit
      _
    %941 = vsyncpa [#allocation4], 1
    %s942 = scalar_lea.sflag [#allocation4], 1
    %943 = vsyncpa %s942, 1
    %944 = vsyncpa [#allocation5], 1
    %s945 = scalar_lea.sflag [#allocation5], 1
    %946 = vsyncpa %s945, 1
    %947 = vsyncpa [#allocation6], 1
    %s948 = scalar_lea.sflag [#allocation6], 1
    %949 = vsyncpa %s948, 1

</llo_original>
